<compile_context>
chip_gen: v6e
topology: v6e:2x2x1
jax: 0.10.0
libtpu: 0.0.40
codegen_flags: <defaults>
</compile_context>

<pallas_src>
import functools

import numpy as np
import jax
import jax.numpy as jnp
from jax.experimental import pallas as pl
from jax.experimental.pallas import tpu as pltpu

# ----------------------------- ANINNP default config -----------------------------
ELEMENTS = ["H", "C", "N", "O"]
NUM_SPECIES = len(ELEMENTS)
DIMER_AEV = True           # default
MODIFIED_AEV = False       # default
USE_BELONGING = True       # default

Rcr, EtaR, ShfR_min, ShfR_n = 5.2, 16.0, 0.9, 16
Rca, EtaA, ShfA_min, ShfA_n = 3.5, 8.0, 0.9, 4
Zeta, ShfZ_n = 32.0, 8

HIDDEN = [64, 32, 16]
APPROX_CH = 1
OUT_CH = 1
CELU_ALPHA = 0.1

S_TOT = NUM_SPECIES * (2 if DIMER_AEV else 1)     # 8 "species" (element x belonging)
ShfR = np.linspace(ShfR_min, Rcr - (Rcr - ShfR_min) / ShfR_n, ShfR_n).astype(np.float32)
ShfA = np.linspace(ShfA_min, Rca - (Rca - ShfA_min) / ShfA_n, ShfA_n).astype(np.float32)
ShfZ = np.linspace(np.pi / ShfZ_n / 2, np.pi - np.pi / ShfZ_n / 2, ShfZ_n).astype(np.float32)

RADIAL_SUB = ShfR_n                               # 16
ANGULAR_SUB = ShfA_n * ShfZ_n                     # 32
NUM_PAIRS = S_TOT * (S_TOT + 1) // 2              # 36
AEV_DIM = S_TOT * RADIAL_SUB + NUM_PAIRS * ANGULAR_SUB   # 128 + 1152 = 1280 (10 x 128 lanes)
IN_DIM = AEV_DIM + APPROX_CH                             # 1281 (approx channel handled as rank-1)


def _build_triu_index(s):
    idx = np.zeros((s, s), dtype=np.int32)
    p = 0
    for a in range(s):
        for b in range(a, s):
            idx[a, b] = p
            idx[b, a] = p
            p += 1
    return idx


TRIU_INDEX = jnp.asarray(_build_triu_index(S_TOT))


# ----------------------------- AEV featurizer (JAX glue) -------------------------
# TODO(synk): the O(A^3) angular term below stays in plain JAX; for realistic atom counts
# it dominates wall-clock and would need its own neighbor-list / scanned Pallas kernel.
def _cutoff_cosine(d, rc):
    return jnp.where(d <= rc, 0.5 * jnp.cos(jnp.pi * d / rc) + 0.5, 0.0)


def compute_aev(species_ext, coordinates):
    """species_ext: (B, A) int in [0, S_TOT-1] (-1 = padding atom); coordinates: (B, A, 3)."""
    B, A = species_ext.shape
    valid = species_ext >= 0                                           # (B, A)
    sp = jnp.clip(species_ext, 0)

    vec = coordinates[:, None, :, :] - coordinates[:, :, None, :]      # (B, A, A, 3): r_j - r_i
    dist = jnp.sqrt(jnp.sum(vec * vec, axis=-1))                       # (B, A, A)
    not_self = ~jnp.eye(A, dtype=bool)[None]
    pair_valid = valid[:, :, None] & valid[:, None, :] & not_self

    # ---- radial sub-AEV: 0.25 * exp(-EtaR*(d-ShfR)^2) * fc(d, Rcr), scattered by species(j)
    mask_r = pair_valid & (dist <= Rcr)
    fc_r = _cutoff_cosine(dist, Rcr)
    rt = 0.25 * jnp.exp(-EtaR * (dist[..., None] - jnp.asarray(ShfR)) ** 2) * fc_r[..., None]
    rt = rt * mask_r[..., None].astype(rt.dtype)                       # (B, A, A, 16)
    onehot_j = jax.nn.one_hot(sp, S_TOT, dtype=rt.dtype) * valid[..., None]
    radial = jnp.einsum("bjs,bijr->bisr", onehot_j, rt)                # (B, A, S, 16)
    radial = radial.reshape(B, A, S_TOT * RADIAL_SUB)

    # ---- angular sub-AEV over unordered neighbor pairs (j, k) of central atom i
    within_a = pair_valid & (dist <= Rca)                              # (B, A, A)
    dot_jk = jnp.einsum("bijx,bikx->bijk", vec, vec)                   # (B, A, A, A)
    denom = jnp.maximum(dist[:, :, :, None] * dist[:, :, None, :], 1e-10)
    cos_ang = dot_jk / denom
    ang = jnp.arccos(0.95 * cos_ang)                                   # (B, A, A, A)

    fc_a = _cutoff_cosine(dist, Rca)
    factor1 = ((1.0 + jnp.cos(ang[..., None] - jnp.asarray(ShfZ))) / 2.0) ** Zeta    # (...,8)
    avg_d = (dist[:, :, :, None] + dist[:, :, None, :]) / 2.0
    factor2 = jnp.exp(-EtaA * (avg_d[..., None] - jnp.asarray(ShfA)) ** 2)           # (...,4)
    fc_prod = fc_a[:, :, :, None] * fc_a[:, :, None, :]

    term = 2.0 * factor1[..., None, :] * factor2[..., :, None] * fc_prod[..., None, None]
    # (B, A, A, A, ShfA=4, ShfZ=8)

    jk_lt = jnp.arange(A)[:, None] < jnp.arange(A)[None, :]            # count each pair once
    tri_mask = within_a[:, :, :, None] & within_a[:, :, None, :] & jk_lt[None, None]
    term = term * tri_mask[..., None, None].astype(term.dtype)

    pair_idx = TRIU_INDEX[sp[:, :, None], sp[:, None, :]]              # (B, A(j), A(k))
    pair_oh = jax.nn.one_hot(pair_idx, NUM_PAIRS, dtype=term.dtype)    # (B, A, A, P)
    angular = jnp.einsum("bjkp,bijkaz->bipaz", pair_oh, term)          # (B, A, P, 4, 8)
    angular = angular.reshape(B, A, NUM_PAIRS * ANGULAR_SUB)

    return jnp.concatenate([radial, angular], axis=-1)                 # (B, A, 1280)


# ----------------------------- Pallas MLP + atom-sum kernel ----------------------
def _celu(x, alpha=CELU_ALPHA):
    # clamp exp argument so the unselected branch never produces inf (f32 VPU/EUP only)
    return jnp.where(x > 0, x, alpha * (jnp.exp(jnp.minimum(x, 0.0) / alpha) - 1.0))


def _tile_vmem_bytes(tm, atoms_per_mol, use_approx, param_bytes):
    """Rough live-VMEM estimate for one grid step (double-buffered inputs)."""
    tile_n = tm * atoms_per_mol
    b = 2 * tile_n * AEV_DIM * 2                              # double-buffered bf16 x tiles
    if use_approx:
        b += 2 * tile_n * 4                                   # approx column (f32)
    b += tile_n * (HIDDEN[0] + HIDDEN[1] + HIDDEN[2]) * 4     # f32 intermediates
    b += 2 * param_bytes                                      # resident weights/biases
    return b


def _pick_tile_molecules(num_mol, atoms_per_mol, use_approx, param_bytes,
                         vmem_budget_bytes=24 << 20):
    """Largest molecule tile under the VMEM budget, preferring >= 2 grid steps.

    Multi-tile candidates must satisfy sublane alignment: tm % 8 == 0 (f32 output
    block) and (tm * A) % 16 == 0 (bf16 x block packs 2 rows per sublane).
    """
    candidates = [
        tm for tm in range(num_mol // 2, 0, -1)
        if num_mol % tm == 0
        and tm % 8 == 0
        and (tm * atoms_per_mol) % 16 == 0
        and _tile_vmem_bytes(tm, atoms_per_mol, use_approx, param_bytes) <= vmem_budget_bytes
    ]
    if candidates:
        return candidates[0]        # largest tm giving >= 2 grid steps within budget
    if _tile_vmem_bytes(num_mol, atoms_per_mol, use_approx, param_bytes) <= vmem_budget_bytes:
        return num_mol              # single full-array tile (full-extent blocks always legal)
    raise ValueError(
        f"No VMEM-feasible tiling for B={num_mol}, A={atoms_per_mol}; pad B to a multiple "
        f"of 8 (and tm*A to a multiple of 16) or lower the VMEM budget per tile.")


def mlp_sum_pallas(x, approx_col, params, *, num_molecules, atoms_per_mol,
                   tile_molecules=None):
    """x: (N, AEV_DIM) bf16 per-atom features; approx_col: (N, 1) f32 or None.
    Returns (B, OUT_CH) f32 per-molecule sums of the per-atom MLP outputs."""
    B, A = num_molecules, atoms_per_mol
    N = B * A
    assert x.shape == (N, AEV_DIM)
    use_approx = approx_col is not None
    if use_approx:
        assert approx_col.shape == (N, 1)

    w1, w1a = params["w1"], params["w1a"]
    b1, w2, b2 = params["b1"], params["w2"], params["b2"]
    w3, b3, w4, b4 = params["w3"], params["b3"], params["w4"], params["b4"]
    weights = (w1, w1a, b1, w2, b2, w3, b3, w4, b4)
    param_bytes = sum(int(p.size) * p.dtype.itemsize for p in weights)

    if tile_molecules is None:
        tm = _pick_tile_molecules(B, A, use_approx, param_bytes)
    else:
        tm = tile_molecules
    if B % tm != 0:
        raise ValueError(f"tile_molecules={tm} must divide B={B}")
    if tm != B and not (tm % 8 == 0 and (tm * A) % 16 == 0):
        raise ValueError(f"tile_molecules={tm} with A={A} must satisfy tm%8==0 and "
                         f"(tm*A)%16==0 for sublane-aligned bf16/f32 blocks")
    tile_n = tm * A
    grid = (B // tm,)

    def kernel(*refs):
        if use_approx:
            (x_ref, ax_ref, w1_ref, w1a_ref, b1_ref, w2_ref, b2_ref,
             w3_ref, b3_ref, w4_ref, b4_ref, out_ref) = refs
        else:
            (x_ref, w1_ref, b1_ref, w2_ref, b2_ref,
             w3_ref, b3_ref, w4_ref, b4_ref, out_ref) = refs

        # layer 1: bf16 operands on the MXU, f32 accumulation; the approx channel (when
        # present) is a rank-1 f32 update instead of a 1281->1408 padded lane layout.
        xt = x_ref[...]                                                    # (tile_n, 1280) bf16
        h = jnp.dot(xt, w1_ref[...], preferred_element_type=jnp.float32)   # (tile_n, 64) f32
        if use_approx:
            h = h + ax_ref[...] * w1a_ref[...]
        h = _celu(h + b1_ref[...])
        # hidden layers are MXU-trivial (K, N <= 64) -> keep everything in f32
        h = _celu(jnp.dot(h, w2_ref[...], preferred_element_type=jnp.float32) + b2_ref[...])
        h3 = _celu(jnp.dot(h, w3_ref[...], preferred_element_type=jnp.float32) + b3_ref[...])
        # per-molecule sum BEFORE the (linear) last layer: atoms of a molecule are
        # contiguous rows, so a reshape + axis-sum replaces the old block-diagonal matmul.
        h3_sum = jnp.sum(h3.reshape(tm, A, HIDDEN[2]), axis=1)             # (tm, 16) f32
        # last layer is linear -> sum(y_a) = (sum h3_a) @ w4 + A * b4
        out_ref[...] = (jnp.dot(h3_sum, w4_ref[...], preferred_element_type=jnp.float32)
                        + jnp.float32(A) * b4_ref[...])

    flops = (2 * N * (AEV_DIM * HIDDEN[0] + HIDDEN[0] * HIDDEN[1] + HIDDEN[1] * HIDDEN[2])
             + N * HIDDEN[2] + 2 * B * HIDDEN[2] * OUT_CH)
    bytes_accessed = (int(x.size) * x.dtype.itemsize
                      + (N * 4 if use_approx else 0)
                      + param_bytes + B * OUT_CH * 4)
    cost = pl.CostEstimate(flops=int(flops), transcendentals=int(N * sum(HIDDEN)),
                           bytes_accessed=int(bytes_accessed))

    const = lambda i: (0, 0)   # weights/biases: same block every step -> stay resident

    in_specs = [pl.BlockSpec((tile_n, AEV_DIM), lambda i: (i, 0))]   # x: streamed atom tiles
    inputs = [x]
    if use_approx:
        in_specs.append(pl.BlockSpec((tile_n, 1), lambda i: (i, 0)))
        inputs.append(approx_col)
        weight_list = [w1, w1a, b1, w2, b2, w3, b3, w4, b4]
    else:
        weight_list = [w1, b1, w2, b2, w3, b3, w4, b4]
    in_specs += [pl.BlockSpec(w.shape, const) for w in weight_list]
    inputs += weight_list

    return pl.pallas_call(
        kernel,
        out_shape=jax.ShapeDtypeStruct((B, OUT_CH), jnp.float32),
        grid=grid,
        in_specs=in_specs,
        out_specs=pl.BlockSpec((tm, OUT_CH), lambda i: (i, 0)),
        compiler_params=pltpu.CompilerParams(
            dimension_semantics=("parallel",),
            vmem_limit_bytes=48 * 1024 * 1024),
        cost_estimate=cost,
    )(*inputs)


# ----------------------------- parameters (deterministic) ------------------------
def init_params(key):
    """Xavier-normal weights, zero biases (matches ANINNP.init_params)."""
    dims = [IN_DIM] + HIDDEN + [OUT_CH]               # [1281, 64, 32, 16, 1]
    keys = jax.random.split(key, len(dims) - 1)
    params = {}
    for li in range(len(dims) - 1):
        fan_in, fan_out = dims[li], dims[li + 1]
        std = np.sqrt(2.0 / (fan_in + fan_out))
        w = std * jax.random.normal(keys[li], (fan_in, fan_out), dtype=jnp.float32)
        if li == 0:
            params["w1"] = w[:AEV_DIM].astype(jnp.bfloat16)   # bf16 MXU operand (bandwidth)
            params["w1a"] = w[AEV_DIM:]                       # (1, 64) approx-channel row, f32
        else:
            params[f"w{li + 1}"] = w
        params[f"b{li + 1}"] = jnp.zeros((1, fan_out), dtype=jnp.float32)
    return params


# ----------------------------- ANINNP forward ------------------------------------
def aninnp_forward(params, species, coordinates, belongings, approx=None,
                   tile_molecules=None):
    """species: (B, A) int32 in [0, NUM_SPECIES-1]; coordinates: (B, A, 3) f32;
    belongings: (B, A) int32 in {1, 2}; approx: optional (B, A) f32.
    Returns (B, OUT_CH) f32."""
    B, A = species.shape
    # branch: use_belonging and dimer_aev and not modified_aev
    species_wb = species + (belongings - 1) * NUM_SPECIES
    aev = compute_aev(species_wb, coordinates)                         # (B, A, 1280) f32

    x = aev.reshape(B * A, AEV_DIM).astype(jnp.bfloat16)               # lane-dense (10x128)
    # approx=None (the default) maps to a zero column in the reference, which contributes
    # nothing after the rank-1 weight -> statically skip the whole path.
    ax = None if approx is None else approx.reshape(B * A, 1).astype(jnp.float32)

    # mask in the reference is all-ones -> index_select/index_add_ collapse to identity,
    # and the final .view(B, A, C).sum(dim=1) is the in-kernel per-molecule reduction.
    return mlp_sum_pallas(x, ax, params, num_molecules=B, atoms_per_mol=A,
                          tile_molecules=tile_molecules)               # (B, OUT_CH)


def aninnp_forward_ref(params, species, coordinates, belongings, approx=None):
    """Pure-JAX reference with identical bf16 casts (for correctness check)."""
    B, A = species.shape
    species_wb = species + (belongings - 1) * NUM_SPECIES
    aev = compute_aev(species_wb, coordinates)
    if approx is None:
        approx = jnp.zeros((B, A), dtype=jnp.float32)
    x = aev.reshape(B * A, AEV_DIM).astype(jnp.bfloat16)
    ax = approx.reshape(B * A, 1).astype(jnp.float32)
    h = jnp.dot(x, params["w1"], preferred_element_type=jnp.float32)
    h = _celu(h + ax * params["w1a"] + params["b1"])
    h = _celu(jnp.dot(h, params["w2"], preferred_element_type=jnp.float32) + params["b2"])
    h = _celu(jnp.dot(h, params["w3"], preferred_element_type=jnp.float32) + params["b3"])
    y = jnp.dot(h, params["w4"], preferred_element_type=jnp.float32) + params["b4"]
    return y.reshape(B, A, OUT_CH).sum(axis=1)


# ----------------------------- main ----------------------------------------------
if __name__ == "__main__":
    key = jax.random.PRNGKey(0)
    k_par, k_sp, k_co, k_ap = jax.random.split(key, 4)

    B, A = 16, 8                                  # 16 small molecules, 8 atoms each
    params = init_params(k_par)

    species = jax.random.randint(k_sp, (B, A), 0, NUM_SPECIES, dtype=jnp.int32)
    coordinates = 1.5 * jax.random.normal(k_co, (B, A, 3), dtype=jnp.float32)
    belongings = jnp.concatenate(
        [jnp.ones((B, A // 2), jnp.int32), 2 * jnp.ones((B, A - A // 2), jnp.int32)], axis=1)
    approx = 0.1 * jax.random.normal(k_ap, (B, A), dtype=jnp.float32)

    # default path (approx=None): auto tile picker -> tm=8, grid=(2,), no approx DMA/FMA
    fwd = jax.jit(aninnp_forward)
    out = jax.block_until_ready(fwd(params, species, coordinates, belongings))
    ref = jax.block_until_ready(
        jax.jit(aninnp_forward_ref)(params, species, coordinates, belongings))
    assert out.shape == (B, OUT_CH)
    assert bool(jnp.all(jnp.isfinite(out)))
    assert bool(jnp.allclose(out, ref, rtol=2e-2, atol=2e-3)), (np.asarray(out), np.asarray(ref))

    # approx path (rank-1 update active), explicit tile_molecules exercises validation
    fwd_ax = jax.jit(functools.partial(aninnp_forward, tile_molecules=8))
    out_ax = jax.block_until_ready(fwd_ax(params, species, coordinates, belongings, approx))
    ref_ax = jax.block_until_ready(
        jax.jit(aninnp_forward_ref)(params, species, coordinates, belongings, approx))
    assert out_ax.shape == (B, OUT_CH)
    assert bool(jnp.all(jnp.isfinite(out_ax)))
    assert bool(jnp.allclose(out_ax, ref_ax, rtol=2e-2, atol=2e-3)), (
        np.asarray(out_ax), np.asarray(ref_ax))

    print("KERNEL_OK")
</pallas_src>

<mosaic_0001>
module attributes {stable_mosaic.version = 11 : i64} {
  func.func @kernel(%arg0: i32, %arg1: memref<64x1280xbf16, #tpu.memory_space<vmem>>, %arg2: memref<1280x64xbf16, #tpu.memory_space<vmem>>, %arg3: memref<1x64xf32, #tpu.memory_space<vmem>>, %arg4: memref<64x32xf32, #tpu.memory_space<vmem>>, %arg5: memref<1x32xf32, #tpu.memory_space<vmem>>, %arg6: memref<32x16xf32, #tpu.memory_space<vmem>>, %arg7: memref<1x16xf32, #tpu.memory_space<vmem>>, %arg8: memref<16x1xf32, #tpu.memory_space<vmem>>, %arg9: memref<1x1xf32, #tpu.memory_space<vmem>>, %arg10: memref<8x1xf32, #tpu.memory_space<vmem>>) attributes {dimension_semantics = [#tpu.dimension_semantics<parallel>], iteration_bounds = array<i64: 2>, scalar_prefetch = 0 : i64, scratch_operands = 0 : i64, tpu.core_type = #tpu.core_type<tc>, window_params = [{transform_indices = @transform_0, window_bounds = array<i64: 64, 1280>}, {pipeline_mode = #tpu.pipeline_mode<synchronous>, transform_indices = @transform_1, window_bounds = array<i64: 1280, 64>}, {pipeline_mode = #tpu.pipeline_mode<synchronous>, transform_indices = @transform_2, window_bounds = array<i64: 1, 64>}, {pipeline_mode = #tpu.pipeline_mode<synchronous>, transform_indices = @transform_3, window_bounds = array<i64: 64, 32>}, {pipeline_mode = #tpu.pipeline_mode<synchronous>, transform_indices = @transform_4, window_bounds = array<i64: 1, 32>}, {pipeline_mode = #tpu.pipeline_mode<synchronous>, transform_indices = @transform_5, window_bounds = array<i64: 32, 16>}, {pipeline_mode = #tpu.pipeline_mode<synchronous>, transform_indices = @transform_6, window_bounds = array<i64: 1, 16>}, {pipeline_mode = #tpu.pipeline_mode<synchronous>, transform_indices = @transform_7, window_bounds = array<i64: 16, 1>}, {pipeline_mode = #tpu.pipeline_mode<synchronous>, transform_indices = @transform_8, window_bounds = array<i64: 1, 1>}, {transform_indices = @transform_9, window_bounds = array<i64: 8, 1>}]} {
    %c0 = arith.constant 0 : index
    %c0_0 = arith.constant 0 : index
    %0 = vector.load %arg1[%c0, %c0_0] : memref<64x1280xbf16, #tpu.memory_space<vmem>>, vector<64x1280xbf16>
    %c0_1 = arith.constant 0 : index
    %c0_2 = arith.constant 0 : index
    %1 = vector.load %arg2[%c0_1, %c0_2] : memref<1280x64xbf16, #tpu.memory_space<vmem>>, vector<1280x64xbf16>
    %cst = arith.constant dense<0.000000e+00> : vector<64x64xf32>
    %2 = tpu.matmul %0, %1, %cst {dimension_numbers = #tpu.dot_dimension_numbers<[1], [0], [0], [1], [0, 0, 1, 1], [], []>} : vector<64x1280xbf16>, vector<1280x64xbf16>, vector<64x64xf32> -> vector<64x64xf32>
    %c0_3 = arith.constant 0 : index
    %c0_4 = arith.constant 0 : index
    %3 = vector.load %arg3[%c0_3, %c0_4] : memref<1x64xf32, #tpu.memory_space<vmem>>, vector<1x64xf32>
    %4 = vector.broadcast %3 : vector<1x64xf32> to vector<64x64xf32>
    %5 = arith.addf %2, %4 : vector<64x64xf32>
    %cst_5 = arith.constant 0.000000e+00 : f32
    %6 = vector.broadcast %cst_5 : f32 to vector<64x64xf32>
    %7 = arith.cmpf ogt, %5, %6 : vector<64x64xf32>
    %cst_6 = arith.constant 0.000000e+00 : f32
    %8 = vector.broadcast %cst_6 : f32 to vector<64x64xf32>
    %9 = arith.minimumf %5, %8 : vector<64x64xf32>
    %cst_7 = arith.constant 1.000000e-01 : f32
    %10 = vector.broadcast %cst_7 : f32 to vector<64x64xf32>
    %11 = arith.divf %9, %10 : vector<64x64xf32>
    %12 = math.exp %11 : vector<64x64xf32>
    %cst_8 = arith.constant 1.000000e+00 : f32
    %13 = vector.broadcast %cst_8 : f32 to vector<64x64xf32>
    %14 = arith.subf %12, %13 : vector<64x64xf32>
    %cst_9 = arith.constant 1.000000e-01 : f32
    %15 = vector.broadcast %cst_9 : f32 to vector<64x64xf32>
    %16 = arith.mulf %15, %14 : vector<64x64xf32>
    %17 = arith.select %7, %5, %16 : vector<64x64xi1>, vector<64x64xf32>
    %c0_10 = arith.constant 0 : index
    %c0_11 = arith.constant 0 : index
    %18 = vector.load %arg4[%c0_10, %c0_11] : memref<64x32xf32, #tpu.memory_space<vmem>>, vector<64x32xf32>
    %cst_12 = arith.constant dense<0.000000e+00> : vector<64x32xf32>
    %19 = tpu.matmul %17, %18, %cst_12 {dimension_numbers = #tpu.dot_dimension_numbers<[1], [0], [0], [1], [0, 0, 1, 1], [], []>} : vector<64x64xf32>, vector<64x32xf32>, vector<64x32xf32> -> vector<64x32xf32>
    %c0_13 = arith.constant 0 : index
    %c0_14 = arith.constant 0 : index
    %20 = vector.load %arg5[%c0_13, %c0_14] : memref<1x32xf32, #tpu.memory_space<vmem>>, vector<1x32xf32>
    %21 = vector.broadcast %20 : vector<1x32xf32> to vector<64x32xf32>
    %22 = arith.addf %19, %21 : vector<64x32xf32>
    %cst_15 = arith.constant 0.000000e+00 : f32
    %23 = vector.broadcast %cst_15 : f32 to vector<64x32xf32>
    %24 = arith.cmpf ogt, %22, %23 : vector<64x32xf32>
    %cst_16 = arith.constant 0.000000e+00 : f32
    %25 = vector.broadcast %cst_16 : f32 to vector<64x32xf32>
    %26 = arith.minimumf %22, %25 : vector<64x32xf32>
    %cst_17 = arith.constant 1.000000e-01 : f32
    %27 = vector.broadcast %cst_17 : f32 to vector<64x32xf32>
    %28 = arith.divf %26, %27 : vector<64x32xf32>
    %29 = math.exp %28 : vector<64x32xf32>
    %cst_18 = arith.constant 1.000000e+00 : f32
    %30 = vector.broadcast %cst_18 : f32 to vector<64x32xf32>
    %31 = arith.subf %29, %30 : vector<64x32xf32>
    %cst_19 = arith.constant 1.000000e-01 : f32
    %32 = vector.broadcast %cst_19 : f32 to vector<64x32xf32>
    %33 = arith.mulf %32, %31 : vector<64x32xf32>
    %34 = arith.select %24, %22, %33 : vector<64x32xi1>, vector<64x32xf32>
    %c0_20 = arith.constant 0 : index
    %c0_21 = arith.constant 0 : index
    %35 = vector.load %arg6[%c0_20, %c0_21] : memref<32x16xf32, #tpu.memory_space<vmem>>, vector<32x16xf32>
    %cst_22 = arith.constant dense<0.000000e+00> : vector<64x16xf32>
    %36 = tpu.matmul %34, %35, %cst_22 {dimension_numbers = #tpu.dot_dimension_numbers<[1], [0], [0], [1], [0, 0, 1, 1], [], []>} : vector<64x32xf32>, vector<32x16xf32>, vector<64x16xf32> -> vector<64x16xf32>
    %c0_23 = arith.constant 0 : index
    %c0_24 = arith.constant 0 : index
    %37 = vector.load %arg7[%c0_23, %c0_24] : memref<1x16xf32, #tpu.memory_space<vmem>>, vector<1x16xf32>
    %38 = vector.broadcast %37 : vector<1x16xf32> to vector<64x16xf32>
    %39 = arith.addf %36, %38 : vector<64x16xf32>
    %cst_25 = arith.constant 0.000000e+00 : f32
    %40 = vector.broadcast %cst_25 : f32 to vector<64x16xf32>
    %41 = arith.cmpf ogt, %39, %40 : vector<64x16xf32>
    %cst_26 = arith.constant 0.000000e+00 : f32
    %42 = vector.broadcast %cst_26 : f32 to vector<64x16xf32>
    %43 = arith.minimumf %39, %42 : vector<64x16xf32>
    %cst_27 = arith.constant 1.000000e-01 : f32
    %44 = vector.broadcast %cst_27 : f32 to vector<64x16xf32>
    %45 = arith.divf %43, %44 : vector<64x16xf32>
    %46 = math.exp %45 : vector<64x16xf32>
    %cst_28 = arith.constant 1.000000e+00 : f32
    %47 = vector.broadcast %cst_28 : f32 to vector<64x16xf32>
    %48 = arith.subf %46, %47 : vector<64x16xf32>
    %cst_29 = arith.constant 1.000000e-01 : f32
    %49 = vector.broadcast %cst_29 : f32 to vector<64x16xf32>
    %50 = arith.mulf %49, %48 : vector<64x16xf32>
    %51 = arith.select %41, %39, %50 : vector<64x16xi1>, vector<64x16xf32>
    %52 = vector.shape_cast %51 : vector<64x16xf32> to vector<8x8x16xf32>
    %cst_30 = arith.constant dense<0.000000e+00> : vector<8x16xf32>
    %53 = vector.multi_reduction <add>, %52, %cst_30 [1] : vector<8x8x16xf32> to vector<8x16xf32>
    %c0_31 = arith.constant 0 : index
    %c0_32 = arith.constant 0 : index
    %54 = vector.load %arg8[%c0_31, %c0_32] : memref<16x1xf32, #tpu.memory_space<vmem>>, vector<16x1xf32>
    %cst_33 = arith.constant dense<0.000000e+00> : vector<8x1xf32>
    %55 = tpu.matmul %53, %54, %cst_33 {dimension_numbers = #tpu.dot_dimension_numbers<[1], [0], [0], [1], [0, 0, 1, 1], [], []>} : vector<8x16xf32>, vector<16x1xf32>, vector<8x1xf32> -> vector<8x1xf32>
    %c0_34 = arith.constant 0 : index
    %c0_35 = arith.constant 0 : index
    %56 = vector.load %arg9[%c0_34, %c0_35] : memref<1x1xf32, #tpu.memory_space<vmem>>, vector<1x1xf32>
    %cst_36 = arith.constant 8.000000e+00 : f32
    %57 = vector.broadcast %cst_36 : f32 to vector<1x1xf32>
    %58 = arith.mulf %57, %56 : vector<1x1xf32>
    %59 = vector.broadcast %58 : vector<1x1xf32> to vector<8x1xf32>
    %60 = arith.addf %55, %59 : vector<8x1xf32>
    %c0_37 = arith.constant 0 : index
    %c0_38 = arith.constant 0 : index
    %61 = vector.load %arg10[%c0_37, %c0_38] : memref<8x1xf32, #tpu.memory_space<vmem>>, vector<8x1xf32>
    tpu.vector_store %arg10[%c0_37, %c0_38], %60 {strides = array<i32>} : memref<8x1xf32, #tpu.memory_space<vmem>>, vector<8x1xf32>,
    return
  }
  func.func @transform_0(%arg0: i32) -> (i32, i32) {
    %c0_i32 = arith.constant 0 : i32
    %c0_i32_0 = arith.constant 0 : i32
    return %arg0, %c0_i32 : i32, i32
  }
  func.func @transform_1(%arg0: i32) -> (i32, i32) {
    %c0_i32 = arith.constant 0 : i32
    %c0_i32_0 = arith.constant 0 : i32
    %c0_i32_1 = arith.constant 0 : i32
    return %c0_i32, %c0_i32_0 : i32, i32
  }
  func.func @transform_2(%arg0: i32) -> (i32, i32) {
    %c0_i32 = arith.constant 0 : i32
    %c0_i32_0 = arith.constant 0 : i32
    %c0_i32_1 = arith.constant 0 : i32
    return %c0_i32, %c0_i32_0 : i32, i32
  }
  func.func @transform_3(%arg0: i32) -> (i32, i32) {
    %c0_i32 = arith.constant 0 : i32
    %c0_i32_0 = arith.constant 0 : i32
    %c0_i32_1 = arith.constant 0 : i32
    return %c0_i32, %c0_i32_0 : i32, i32
  }
  func.func @transform_4(%arg0: i32) -> (i32, i32) {
    %c0_i32 = arith.constant 0 : i32
    %c0_i32_0 = arith.constant 0 : i32
    %c0_i32_1 = arith.constant 0 : i32
    return %c0_i32, %c0_i32_0 : i32, i32
  }
  func.func @transform_5(%arg0: i32) -> (i32, i32) {
    %c0_i32 = arith.constant 0 : i32
    %c0_i32_0 = arith.constant 0 : i32
    %c0_i32_1 = arith.constant 0 : i32
    return %c0_i32, %c0_i32_0 : i32, i32
  }
  func.func @transform_6(%arg0: i32) -> (i32, i32) {
    %c0_i32 = arith.constant 0 : i32
    %c0_i32_0 = arith.constant 0 : i32
    %c0_i32_1 = arith.constant 0 : i32
    return %c0_i32, %c0_i32_0 : i32, i32
  }
  func.func @transform_7(%arg0: i32) -> (i32, i32) {
    %c0_i32 = arith.constant 0 : i32
    %c0_i32_0 = arith.constant 0 : i32
    %c0_i32_1 = arith.constant 0 : i32
    return %c0_i32, %c0_i32_0 : i32, i32
  }
  func.func @transform_8(%arg0: i32) -> (i32, i32) {
    %c0_i32 = arith.constant 0 : i32
    %c0_i32_0 = arith.constant 0 : i32
    %c0_i32_1 = arith.constant 0 : i32
    return %c0_i32, %c0_i32_0 : i32, i32
  }
  func.func @transform_9(%arg0: i32) -> (i32, i32) {
    %c0_i32 = arith.constant 0 : i32
    %c0_i32_0 = arith.constant 0 : i32
    return %arg0, %c0_i32 : i32, i32
  }
}

</mosaic_0001>

<llo_original>
// kernel: aninnp_forward.1
$region0: #{aninnp_forward.1}
  #allocation0 [shape = 'u32[]', space=smem, size = 0x4, offset = 0x4, fixed_abs, tag = 'smem constant byte address 0x4 - core index']
  #allocation1 [shape = 'u32[144,128]{1,0:T(1,128)}', space=vmem, size = 0x12000, scoped, tag = 'internal scratch']
  #allocation2 [shape = 'f32[1,1]{1,0:T(1,128)S(1)}', space=vmem, size = 0x200, scoped, tag = 'scoped memory for aninnp_forward.1']
  %s0 = inlined_call_operand.vmem [shape: bf16[128,1280], index: 0, kind: input, shape index: {}]
  %s1 = inlined_call_operand.vmem [shape: bf16[1280,64], index: 1, kind: input, shape index: {}]
  %s2 = inlined_call_operand.vmem [shape: f32[1,64], index: 2, kind: input, shape index: {}]
  %s3 = inlined_call_operand.vmem [shape: f32[64,32], index: 3, kind: input, shape index: {}]
  %s4 = inlined_call_operand.vmem [shape: f32[1,32], index: 4, kind: input, shape index: {}]
  %s5 = inlined_call_operand.vmem [shape: f32[32,16], index: 5, kind: input, shape index: {}]
  %s6 = inlined_call_operand.vmem [shape: f32[1,16], index: 6, kind: input, shape index: {}]
  %s7 = inlined_call_operand.vmem [shape: f32[16,1], index: 7, kind: input, shape index: {}]
  %s8 = inlined_call_operand.<no memory space> [shape: f32[1,1], index: 8, kind: input, shape index: {}]
  %s9 = inlined_call_operand.vmem [shape: f32[16,1], index: 9, kind: output, shape index: {}]
  %s10 = sld [smem:[#allocation0]]
  $region69: #{aninnp_forward.1} parent=0
    _
  %s12 = ssub.s32 1, %s10
  %s13 = scalar_select 0, %s12, %s10
  %v14 = vstv %s8
  %15 = vst [vmem:[#allocation2] sm:$0x1] %v14
  loop: start=0, step=1, limit=4
  $region2: #{aninnp_forward.1} parent=0 // loop_pre_header
    _
  $region3: #{aninnp_forward.1} parent=0 // loop_header
    %s17 = sphi 0, %s21
    %p18 = scmp.ge.s32.totalorder %s17, 4
    %s27 = sphi 0, %s29
    %s30 = sphi 0, %s27
    %s31 = sphi 0, %s30
    %s47 = sphi 0, %s31
    %s51 = sphi 0, %s51
    %s53 = sphi 0, %s51
    %s54 = sphi 0, %s53
    %s68 = sphi 0, %s54
    %s72 = sphi 0, %s72
    %s74 = sphi 0, %s72
    %s75 = sphi 0, %s74
    %s89 = sphi 0, %s75
    %s93 = sphi 0, %s93
    %s95 = sphi 0, %s93
    %s96 = sphi 0, %s95
    %s110 = sphi 0, %s96
    %s114 = sphi 0, %s114
    %s116 = sphi 0, %s114
    %s117 = sphi 0, %s116
    %s131 = sphi 0, %s117
    %s135 = sphi 0, %s135
    %s137 = sphi 0, %s135
    %s138 = sphi 0, %s137
    %s152 = sphi 0, %s138
    %s156 = sphi 0, %s156
    %s158 = sphi 0, %s156
    %s159 = sphi 0, %s158
    %s173 = sphi 0, %s159
    %s177 = sphi 0, %s177
    %s179 = sphi 0, %s177
    %s180 = sphi 0, %s179
    %s194 = sphi 0, %s180
    %s198 = sphi 0, %s198
    %s200 = sphi 0, %s198
    %s201 = sphi 0, %s200
    %s215 = sphi 0, %s201
    %s221 = sphi 0, %s223
    %s224 = sphi 0, %s221
    %s225 = sphi 0, %s224
    %s241 = sphi 0, %s225
  $region4: #{aninnp_forward.1} parent=0 // loop_header_branch
    %20 = sbr.rel (%p18) target = $region8
  $region5: #{aninnp_forward.1} parent=0 // loop_body
    %s22 = ssub.s32 %s17, 1
    %s23 = ssub.s32 %s17, 2
    %s24 = sadd.s32 %s17, 1
    %s25 = ssub.s32 %s17, %s24
    %p26 = scmp.eq.s32.totalorder %s25, 0
    %s28 = sadd.s32 %s27, 1
    %s29 = scalar_select %p26, %s27, %s28
    %p32 = pneg %p26
    %p33 = scmp.eq.s32.totalorder %s17, 1
    %p34 = por %p32, %p33
    %p35 = scmp.ne.s32.totalorder %s27, %s30
    %p36 = scmp.eq.s32.totalorder %s17, 0
    %p37 = por %p35, %p36
    %p38 = scmp.ne.s32.totalorder %s27, %s30
    %p39 = scmp.eq.s32.totalorder %s22, 1
    %p40 = por %p38, %p39
    %p41 = scmp.ne.s32.totalorder %s30, %s31
    %p42 = scmp.eq.s32.totalorder %s22, 0
    %p43 = por %p41, %p42
    %p44 = scmp.ne.s32.totalorder %s30, %s31
    %p45 = scmp.eq.s32.totalorder %s23, 1
    %p46 = por %p44, %p45
    %p48 = scmp.ne.s32.totalorder %s31, %s47
    %p49 = scmp.eq.s32.totalorder %s23, 0
    %p50 = por %p48, %p49
    %s52 = sadd.s32 %s51, 1
    %p55 = scmp.eq.s32.totalorder %s17, 1
    %p56 = scmp.ne.s32.totalorder %s51, %s53
    %p57 = scmp.eq.s32.totalorder %s17, 0
    %p58 = por %p56, %p57
    %p59 = scmp.ne.s32.totalorder %s51, %s53
    %p60 = scmp.eq.s32.totalorder %s22, 1
    %p61 = por %p59, %p60
    %p62 = scmp.ne.s32.totalorder %s53, %s54
    %p63 = scmp.eq.s32.totalorder %s22, 0
    %p64 = por %p62, %p63
    %p65 = scmp.ne.s32.totalorder %s53, %s54
    %p66 = scmp.eq.s32.totalorder %s23, 1
    %p67 = por %p65, %p66
    %p69 = scmp.ne.s32.totalorder %s54, %s68
    %p70 = scmp.eq.s32.totalorder %s23, 0
    %p71 = por %p69, %p70
    %s73 = sadd.s32 %s72, 1
    %p76 = scmp.eq.s32.totalorder %s17, 1
    %p77 = scmp.ne.s32.totalorder %s72, %s74
    %p78 = scmp.eq.s32.totalorder %s17, 0
    %p79 = por %p77, %p78
    %p80 = scmp.ne.s32.totalorder %s72, %s74
    %p81 = scmp.eq.s32.totalorder %s22, 1
    %p82 = por %p80, %p81
    %p83 = scmp.ne.s32.totalorder %s74, %s75
    %p84 = scmp.eq.s32.totalorder %s22, 0
    %p85 = por %p83, %p84
    %p86 = scmp.ne.s32.totalorder %s74, %s75
    %p87 = scmp.eq.s32.totalorder %s23, 1
    %p88 = por %p86, %p87
    %p90 = scmp.ne.s32.totalorder %s75, %s89
    %p91 = scmp.eq.s32.totalorder %s23, 0
    %p92 = por %p90, %p91
    %s94 = sadd.s32 %s93, 1
    %p97 = scmp.eq.s32.totalorder %s17, 1
    %p98 = scmp.ne.s32.totalorder %s93, %s95
    %p99 = scmp.eq.s32.totalorder %s17, 0
    %p100 = por %p98, %p99
    %p101 = scmp.ne.s32.totalorder %s93, %s95
    %p102 = scmp.eq.s32.totalorder %s22, 1
    %p103 = por %p101, %p102
    %p104 = scmp.ne.s32.totalorder %s95, %s96
    %p105 = scmp.eq.s32.totalorder %s22, 0
    %p106 = por %p104, %p105
    %p107 = scmp.ne.s32.totalorder %s95, %s96
    %p108 = scmp.eq.s32.totalorder %s23, 1
    %p109 = por %p107, %p108
    %p111 = scmp.ne.s32.totalorder %s96, %s110
    %p112 = scmp.eq.s32.totalorder %s23, 0
    %p113 = por %p111, %p112
    %s115 = sadd.s32 %s114, 1
    %p118 = scmp.eq.s32.totalorder %s17, 1
    %p119 = scmp.ne.s32.totalorder %s114, %s116
    %p120 = scmp.eq.s32.totalorder %s17, 0
    %p121 = por %p119, %p120
    %p122 = scmp.ne.s32.totalorder %s114, %s116
    %p123 = scmp.eq.s32.totalorder %s22, 1
    %p124 = por %p122, %p123
    %p125 = scmp.ne.s32.totalorder %s116, %s117
    %p126 = scmp.eq.s32.totalorder %s22, 0
    %p127 = por %p125, %p126
    %p128 = scmp.ne.s32.totalorder %s116, %s117
    %p129 = scmp.eq.s32.totalorder %s23, 1
    %p130 = por %p128, %p129
    %p132 = scmp.ne.s32.totalorder %s117, %s131
    %p133 = scmp.eq.s32.totalorder %s23, 0
    %p134 = por %p132, %p133
    %s136 = sadd.s32 %s135, 1
    %p139 = scmp.eq.s32.totalorder %s17, 1
    %p140 = scmp.ne.s32.totalorder %s135, %s137
    %p141 = scmp.eq.s32.totalorder %s17, 0
    %p142 = por %p140, %p141
    %p143 = scmp.ne.s32.totalorder %s135, %s137
    %p144 = scmp.eq.s32.totalorder %s22, 1
    %p145 = por %p143, %p144
    %p146 = scmp.ne.s32.totalorder %s137, %s138
    %p147 = scmp.eq.s32.totalorder %s22, 0
    %p148 = por %p146, %p147
    %p149 = scmp.ne.s32.totalorder %s137, %s138
    %p150 = scmp.eq.s32.totalorder %s23, 1
    %p151 = por %p149, %p150
    %p153 = scmp.ne.s32.totalorder %s138, %s152
    %p154 = scmp.eq.s32.totalorder %s23, 0
    %p155 = por %p153, %p154
    %s157 = sadd.s32 %s156, 1
    %p160 = scmp.eq.s32.totalorder %s17, 1
    %p161 = scmp.ne.s32.totalorder %s156, %s158
    %p162 = scmp.eq.s32.totalorder %s17, 0
    %p163 = por %p161, %p162
    %p164 = scmp.ne.s32.totalorder %s156, %s158
    %p165 = scmp.eq.s32.totalorder %s22, 1
    %p166 = por %p164, %p165
    %p167 = scmp.ne.s32.totalorder %s158, %s159
    %p168 = scmp.eq.s32.totalorder %s22, 0
    %p169 = por %p167, %p168
    %p170 = scmp.ne.s32.totalorder %s158, %s159
    %p171 = scmp.eq.s32.totalorder %s23, 1
    %p172 = por %p170, %p171
    %p174 = scmp.ne.s32.totalorder %s159, %s173
    %p175 = scmp.eq.s32.totalorder %s23, 0
    %p176 = por %p174, %p175
    %s178 = sadd.s32 %s177, 1
    %p181 = scmp.eq.s32.totalorder %s17, 1
    %p182 = scmp.ne.s32.totalorder %s177, %s179
    %p183 = scmp.eq.s32.totalorder %s17, 0
    %p184 = por %p182, %p183
    %p185 = scmp.ne.s32.totalorder %s177, %s179
    %p186 = scmp.eq.s32.totalorder %s22, 1
    %p187 = por %p185, %p186
    %p188 = scmp.ne.s32.totalorder %s179, %s180
    %p189 = scmp.eq.s32.totalorder %s22, 0
    %p190 = por %p188, %p189
    %p191 = scmp.ne.s32.totalorder %s179, %s180
    %p192 = scmp.eq.s32.totalorder %s23, 1
    %p193 = por %p191, %p192
    %p195 = scmp.ne.s32.totalorder %s180, %s194
    %p196 = scmp.eq.s32.totalorder %s23, 0
    %p197 = por %p195, %p196
    %s199 = sadd.s32 %s198, 1
    %p202 = scmp.eq.s32.totalorder %s17, 1
    %p203 = scmp.ne.s32.totalorder %s198, %s200
    %p204 = scmp.eq.s32.totalorder %s17, 0
    %p205 = por %p203, %p204
    %p206 = scmp.ne.s32.totalorder %s198, %s200
    %p207 = scmp.eq.s32.totalorder %s22, 1
    %p208 = por %p206, %p207
    %p209 = scmp.ne.s32.totalorder %s200, %s201
    %p210 = scmp.eq.s32.totalorder %s22, 0
    %p211 = por %p209, %p210
    %p212 = scmp.ne.s32.totalorder %s200, %s201
    %p213 = scmp.eq.s32.totalorder %s23, 1
    %p214 = por %p212, %p213
    %p216 = scmp.ne.s32.totalorder %s201, %s215
    %p217 = scmp.eq.s32.totalorder %s23, 0
    %p218 = por %p216, %p217
    %s219 = ssub.s32 %s17, %s24
    %p220 = scmp.eq.s32.totalorder %s219, 0
    %s222 = sadd.s32 %s221, 1
    %s223 = scalar_select %p220, %s221, %s222
    %p226 = pneg %p220
    %p227 = scmp.eq.s32.totalorder %s17, 1
    %p228 = por %p226, %p227
    %p229 = scmp.ne.s32.totalorder %s221, %s224
    %p230 = scmp.eq.s32.totalorder %s17, 0
    %p231 = por %p229, %p230
    %p232 = scmp.ne.s32.totalorder %s221, %s224
    %p233 = scmp.eq.s32.totalorder %s22, 1
    %p234 = por %p232, %p233
    %p235 = scmp.ne.s32.totalorder %s224, %s225
    %p236 = scmp.eq.s32.totalorder %s22, 0
    %p237 = por %p235, %p236
    %p238 = scmp.ne.s32.totalorder %s224, %s225
    %p239 = scmp.eq.s32.totalorder %s23, 1
    %p240 = por %p238, %p239
    %p242 = scmp.ne.s32.totalorder %s225, %s241
    %p243 = scmp.eq.s32.totalorder %s23, 0
    %p244 = por %p242, %p243
    %p245 = scmp.le.s32.totalorder 1, %s17
    %p246 = scmp.lt.s32.totalorder %s17, 3
    %p247 = pnand %p245, %p246
    %p248 = pneg %p247
    // Predicated region
    $region9: #{aninnp_forward.1} parent=5 // pred_check
      _
    $region10: #{aninnp_forward.1} parent=5 // pred_check_branch
      %250 = sbr.rel (%p247) target = $region12
    $region11: #{aninnp_forward.1} parent=5 // pred_region
      %s251 = ssub.s32 %s17, 1
      // Predicated region
      $region13: #{aninnp_forward.1} parent=11 // pred_check
        %p252 = pneg %p64
      $region14: #{aninnp_forward.1} parent=11 // pred_check_branch
        %254 = sbr.rel (%p252) target = $region16
      $region15: #{aninnp_forward.1} parent=11 // pred_region
        _
      $region16: #{aninnp_forward.1} parent=11 // pred_fallthru
        _
      // Predicated region
      $region17: #{aninnp_forward.1} parent=11 // pred_check
        %p255 = pneg %p85
      $region18: #{aninnp_forward.1} parent=11 // pred_check_branch
        %257 = sbr.rel (%p255) target = $region20
      $region19: #{aninnp_forward.1} parent=11 // pred_region
        _
      $region20: #{aninnp_forward.1} parent=11 // pred_fallthru
        _
      // Predicated region
      $region21: #{aninnp_forward.1} parent=11 // pred_check
        %p258 = pneg %p106
      $region22: #{aninnp_forward.1} parent=11 // pred_check_branch
        %260 = sbr.rel (%p258) target = $region24
      $region23: #{aninnp_forward.1} parent=11 // pred_region
        _
      $region24: #{aninnp_forward.1} parent=11 // pred_fallthru
        _
      // Predicated region
      $region25: #{aninnp_forward.1} parent=11 // pred_check
        %p261 = pneg %p127
      $region26: #{aninnp_forward.1} parent=11 // pred_check_branch
        %263 = sbr.rel (%p261) target = $region28
      $region27: #{aninnp_forward.1} parent=11 // pred_region
        _
      $region28: #{aninnp_forward.1} parent=11 // pred_fallthru
        _
      // Predicated region
      $region29: #{aninnp_forward.1} parent=11 // pred_check
        %p264 = pneg %p148
      $region30: #{aninnp_forward.1} parent=11 // pred_check_branch
        %266 = sbr.rel (%p264) target = $region32
      $region31: #{aninnp_forward.1} parent=11 // pred_region
        _
      $region32: #{aninnp_forward.1} parent=11 // pred_fallthru
        _
      // Predicated region
      $region33: #{aninnp_forward.1} parent=11 // pred_check
        %p267 = pneg %p169
      $region34: #{aninnp_forward.1} parent=11 // pred_check_branch
        %269 = sbr.rel (%p267) target = $region36
      $region35: #{aninnp_forward.1} parent=11 // pred_region
        _
      $region36: #{aninnp_forward.1} parent=11 // pred_fallthru
        _
      // Predicated region
      $region37: #{aninnp_forward.1} parent=11 // pred_check
        %p270 = pneg %p190
      $region38: #{aninnp_forward.1} parent=11 // pred_check_branch
        %272 = sbr.rel (%p270) target = $region40
      $region39: #{aninnp_forward.1} parent=11 // pred_region
        _
      $region40: #{aninnp_forward.1} parent=11 // pred_fallthru
        _
      // Predicated region
      $region41: #{aninnp_forward.1} parent=11 // pred_check
        %p273 = pneg %p211
      $region42: #{aninnp_forward.1} parent=11 // pred_check_branch
        %275 = sbr.rel (%p273) target = $region44
      $region43: #{aninnp_forward.1} parent=11 // pred_region
        _
      $region44: #{aninnp_forward.1} parent=11 // pred_fallthru
        _
    $region12: #{aninnp_forward.1} parent=5 // pred_fallthru
      _
    %p276 = scmp.lt.s32.totalorder %s17, 2
    // Predicated region
    $region45: #{aninnp_forward.1} parent=5 // pred_check
      %p277 = pneg %p276
    $region46: #{aninnp_forward.1} parent=5 // pred_check_branch
      %279 = sbr.rel (%p277) target = $region48
    $region47: #{aninnp_forward.1} parent=5 // pred_region
      // Predicated region
      $region49: #{aninnp_forward.1} parent=47 // pred_check
        %p280 = pneg %p37
      $region50: #{aninnp_forward.1} parent=47 // pred_check_branch
        %282 = sbr.rel (%p280) target = $region52
      $region51: #{aninnp_forward.1} parent=47 // pred_region
        %s283 = smul.u32 8, %s17
        %p284 = scmp.lt.s32.totalorder %s283, 15
        %s285 = scalar_select %p284, %s283, 15
        %s286 = smul.addr %s285, 10
        %s287 = smul.addr %s286, 4
        %s288 = scalar_lea.vmem %s0, %s287
        %s289 = smul.u32 8, %s17
      $region52: #{aninnp_forward.1} parent=47 // pred_fallthru
        _
    $region48: #{aninnp_forward.1} parent=5 // pred_fallthru
      _
    %p290 = scmp.le.s32.totalorder 1, %s17
    %p291 = scmp.lt.s32.totalorder %s17, 3
    %p292 = pnand %p290, %p291
    %p293 = pneg %p292
    // Predicated region
    $region53: #{aninnp_forward.1} parent=5 // pred_check
      _
    $region54: #{aninnp_forward.1} parent=5 // pred_check_branch
      %295 = sbr.rel (%p292) target = $region56
    $region55: #{aninnp_forward.1} parent=5 // pred_region
      %s296 = ssub.s32 %s17, 1
      %s297 = smul.u32 8, %s22
      %p298 = scmp.lt.s32.totalorder %s297, 15
      %s299 = scalar_select %p298, %s297, 15
      %s300 = smul.addr %s299, 10
      %s301 = smul.addr %s300, 4
      %s302 = scalar_lea.vmem %s0, %s301
      %p303 = pneg %p43
      %p304 = pneg %p40
      %p305 = pneg %p64
      %p306 = pneg %p61
      %p307 = pneg %p85
      %p308 = pneg %p82
      %p309 = pneg %p106
      %p310 = pneg %p103
      %p311 = pneg %p127
      %p312 = pneg %p124
      %p313 = pneg %p148
      %p314 = pneg %p145
      %p315 = pneg %p169
      %p316 = pneg %p166
      %p317 = pneg %p190
      %p318 = pneg %p187
      %p319 = pneg %p211
      %p320 = pneg %p208
      %p321 = pneg %p237
      %p322 = pneg %p234
      %p323 = scmp.lt.s32.totalorder %s22, 1
      %s324 = scalar_select %p323, %s22, 1
      %s325 = smul.addr %s324, 8
      %s326 = scalar_lea.vmem %s9, %s325
      %s327 = smul.u32 8, %s22
      %p328 = scmp.lt.s32.totalorder %s327, 15
      %s329 = scalar_select %p328, %s327, 15
      %s330 = smul.addr %s329, 10
      %s331 = smul.addr %s330, 4
      %s332 = scalar_lea.vmem %s0, %s331
      %s333 = smul.u32 8, %s22
      %p334 = scmp.lt.s32.totalorder %s22, 1
      %s335 = scalar_select %p334, %s22, 1
      %s336 = smul.addr %s335, 8
      %s337 = scalar_lea.vmem %s9, %s336
      %v339 = vld [vmem:[%s332] sm:$0xff]
      %v340 = vld [vmem:[%s332 + $0x8] sm:$0xff]
      %v341 = vld [vmem:[%s332 + $0x10] sm:$0xff]
      %v342 = vld [vmem:[%s332 + $0x18] sm:$0xff]
      %v343 = vld [vmem:[%s332 + $0x20] sm:$0xff]
      %v344 = vld [vmem:[%s332 + $0x28] sm:$0xff]
      %v345 = vld [vmem:[%s332 + $0x30] sm:$0xff]
      %v346 = vld [vmem:[%s332 + $0x38] sm:$0xff]
      %v347 = vld [vmem:[%s332 + $0x40] sm:$0xff]
      %v348 = vld [vmem:[%s332 + $0x48] sm:$0xff]
      %v349 = vld [vmem:[%s332 + $0x50] sm:$0xff]
      %v350 = vld [vmem:[%s332 + $0x58] sm:$0xff]
      %v351 = vld [vmem:[%s332 + $0x60] sm:$0xff]
      %v352 = vld [vmem:[%s332 + $0x68] sm:$0xff]
      %v353 = vld [vmem:[%s332 + $0x70] sm:$0xff]
      %v354 = vld [vmem:[%s332 + $0x78] sm:$0xff]
      %v355 = vld [vmem:[%s332 + $0x80] sm:$0xff]
      %v356 = vld [vmem:[%s332 + $0x88] sm:$0xff]
      %v357 = vld [vmem:[%s332 + $0x90] sm:$0xff]
      %v358 = vld [vmem:[%s332 + $0x98] sm:$0xff]
      %v359 = vld [vmem:[%s332 + $0xa0] sm:$0xff]
      %v360 = vld [vmem:[%s332 + $0xa8] sm:$0xff]
      %v361 = vld [vmem:[%s332 + $0xb0] sm:$0xff]
      %v362 = vld [vmem:[%s332 + $0xb8] sm:$0xff]
      %v363 = vld [vmem:[%s332 + $0xc0] sm:$0xff]
      %v364 = vld [vmem:[%s332 + $0xc8] sm:$0xff]
      %v365 = vld [vmem:[%s332 + $0xd0] sm:$0xff]
      %v366 = vld [vmem:[%s332 + $0xd8] sm:$0xff]
      %v367 = vld [vmem:[%s332 + $0xe0] sm:$0xff]
      %v368 = vld [vmem:[%s332 + $0xe8] sm:$0xff]
      %v369 = vld [vmem:[%s332 + $0xf0] sm:$0xff]
      %v370 = vld [vmem:[%s332 + $0xf8] sm:$0xff]
      %v371 = vld [vmem:[%s332 + $0x100] sm:$0xff]
      %v372 = vld [vmem:[%s332 + $0x108] sm:$0xff]
      %v373 = vld [vmem:[%s332 + $0x110] sm:$0xff]
      %v374 = vld [vmem:[%s332 + $0x118] sm:$0xff]
      %v375 = vld [vmem:[%s332 + $0x120] sm:$0xff]
      %v376 = vld [vmem:[%s332 + $0x128] sm:$0xff]
      %v377 = vld [vmem:[%s332 + $0x130] sm:$0xff]
      %v378 = vld [vmem:[%s332 + $0x138] sm:$0xff]
      %v379 = vld [vmem:[%s1] sm:$0xf]
      %v380 = vld [vmem:[%s1 + $0x4] sm:$0xf]
      %v381 = vld [vmem:[%s1 + $0x8] sm:$0xf]
      %v382 = vld [vmem:[%s1 + $0xc] sm:$0xf]
      %v383 = vld [vmem:[%s1 + $0x10] sm:$0xf]
      %v384 = vld [vmem:[%s1 + $0x14] sm:$0xf]
      %v385 = vld [vmem:[%s1 + $0x18] sm:$0xf]
      %v386 = vld [vmem:[%s1 + $0x1c] sm:$0xf]
      %v387 = vld [vmem:[%s1 + $0x20] sm:$0xf]
      %v388 = vld [vmem:[%s1 + $0x24] sm:$0xf]
      %v389 = vld [vmem:[%s1 + $0x28] sm:$0xf]
      %v390 = vld [vmem:[%s1 + $0x2c] sm:$0xf]
      %v391 = vld [vmem:[%s1 + $0x30] sm:$0xf]
      %v392 = vld [vmem:[%s1 + $0x34] sm:$0xf]
      %v393 = vld [vmem:[%s1 + $0x38] sm:$0xf]
      %v394 = vld [vmem:[%s1 + $0x3c] sm:$0xf]
      %v395 = vld [vmem:[%s1 + $0x40] sm:$0xf]
      %v396 = vld [vmem:[%s1 + $0x44] sm:$0xf]
      %v397 = vld [vmem:[%s1 + $0x48] sm:$0xf]
      %v398 = vld [vmem:[%s1 + $0x4c] sm:$0xf]
      %v399 = vld [vmem:[%s1 + $0x50] sm:$0xf]
      %v400 = vld [vmem:[%s1 + $0x54] sm:$0xf]
      %v401 = vld [vmem:[%s1 + $0x58] sm:$0xf]
      %v402 = vld [vmem:[%s1 + $0x5c] sm:$0xf]
      %v403 = vld [vmem:[%s1 + $0x60] sm:$0xf]
      %v404 = vld [vmem:[%s1 + $0x64] sm:$0xf]
      %v405 = vld [vmem:[%s1 + $0x68] sm:$0xf]
      %v406 = vld [vmem:[%s1 + $0x6c] sm:$0xf]
      %v407 = vld [vmem:[%s1 + $0x70] sm:$0xf]
      %v408 = vld [vmem:[%s1 + $0x74] sm:$0xf]
      %v409 = vld [vmem:[%s1 + $0x78] sm:$0xf]
      %v410 = vld [vmem:[%s1 + $0x7c] sm:$0xf]
      %v411 = vld [vmem:[%s1 + $0x80] sm:$0xf]
      %v412 = vld [vmem:[%s1 + $0x84] sm:$0xf]
      %v413 = vld [vmem:[%s1 + $0x88] sm:$0xf]
      %v414 = vld [vmem:[%s1 + $0x8c] sm:$0xf]
      %v415 = vld [vmem:[%s1 + $0x90] sm:$0xf]
      %v416 = vld [vmem:[%s1 + $0x94] sm:$0xf]
      %v417 = vld [vmem:[%s1 + $0x98] sm:$0xf]
      %v418 = vld [vmem:[%s1 + $0x9c] sm:$0xf]
      %v419 = vld [vmem:[%s1 + $0xa0] sm:$0xf]
      %v420 = vld [vmem:[%s1 + $0xa4] sm:$0xf]
      %v421 = vld [vmem:[%s1 + $0xa8] sm:$0xf]
      %v422 = vld [vmem:[%s1 + $0xac] sm:$0xf]
      %v423 = vld [vmem:[%s1 + $0xb0] sm:$0xf]
      %v424 = vld [vmem:[%s1 + $0xb4] sm:$0xf]
      %v425 = vld [vmem:[%s1 + $0xb8] sm:$0xf]
      %v426 = vld [vmem:[%s1 + $0xbc] sm:$0xf]
      %v427 = vld [vmem:[%s1 + $0xc0] sm:$0xf]
      %v428 = vld [vmem:[%s1 + $0xc4] sm:$0xf]
      %v429 = vld [vmem:[%s1 + $0xc8] sm:$0xf]
      %v430 = vld [vmem:[%s1 + $0xcc] sm:$0xf]
      %v431 = vld [vmem:[%s1 + $0xd0] sm:$0xf]
      %v432 = vld [vmem:[%s1 + $0xd4] sm:$0xf]
      %v433 = vld [vmem:[%s1 + $0xd8] sm:$0xf]
      %v434 = vld [vmem:[%s1 + $0xdc] sm:$0xf]
      %v435 = vld [vmem:[%s1 + $0xe0] sm:$0xf]
      %v436 = vld [vmem:[%s1 + $0xe4] sm:$0xf]
      %v437 = vld [vmem:[%s1 + $0xe8] sm:$0xf]
      %v438 = vld [vmem:[%s1 + $0xec] sm:$0xf]
      %v439 = vld [vmem:[%s1 + $0xf0] sm:$0xf]
      %v440 = vld [vmem:[%s1 + $0xf4] sm:$0xf]
      %v441 = vld [vmem:[%s1 + $0xf8] sm:$0xf]
      %v442 = vld [vmem:[%s1 + $0xfc] sm:$0xf]
      %v443 = vld [vmem:[%s1 + $0x100] sm:$0xf]
      %v444 = vld [vmem:[%s1 + $0x104] sm:$0xf]
      %v445 = vld [vmem:[%s1 + $0x108] sm:$0xf]
      %v446 = vld [vmem:[%s1 + $0x10c] sm:$0xf]
      %v447 = vld [vmem:[%s1 + $0x110] sm:$0xf]
      %v448 = vld [vmem:[%s1 + $0x114] sm:$0xf]
      %v449 = vld [vmem:[%s1 + $0x118] sm:$0xf]
      %v450 = vld [vmem:[%s1 + $0x11c] sm:$0xf]
      %v451 = vld [vmem:[%s1 + $0x120] sm:$0xf]
      %v452 = vld [vmem:[%s1 + $0x124] sm:$0xf]
      %v453 = vld [vmem:[%s1 + $0x128] sm:$0xf]
      %v454 = vld [vmem:[%s1 + $0x12c] sm:$0xf]
      %v455 = vld [vmem:[%s1 + $0x130] sm:$0xf]
      %v456 = vld [vmem:[%s1 + $0x134] sm:$0xf]
      %v457 = vld [vmem:[%s1 + $0x138] sm:$0xf]
      %v458 = vld [vmem:[%s1 + $0x13c] sm:$0xf]
      %v459 = vld [vmem:[%s1 + $0x140] sm:$0xf]
      %v460 = vld [vmem:[%s1 + $0x144] sm:$0xf]
      %v461 = vld [vmem:[%s1 + $0x148] sm:$0xf]
      %v462 = vld [vmem:[%s1 + $0x14c] sm:$0xf]
      %v463 = vld [vmem:[%s1 + $0x150] sm:$0xf]
      %v464 = vld [vmem:[%s1 + $0x154] sm:$0xf]
      %v465 = vld [vmem:[%s1 + $0x158] sm:$0xf]
      %v466 = vld [vmem:[%s1 + $0x15c] sm:$0xf]
      %v467 = vld [vmem:[%s1 + $0x160] sm:$0xf]
      %v468 = vld [vmem:[%s1 + $0x164] sm:$0xf]
      %v469 = vld [vmem:[%s1 + $0x168] sm:$0xf]
      %v470 = vld [vmem:[%s1 + $0x16c] sm:$0xf]
      %v471 = vld [vmem:[%s1 + $0x170] sm:$0xf]
      %v472 = vld [vmem:[%s1 + $0x174] sm:$0xf]
      %v473 = vld [vmem:[%s1 + $0x178] sm:$0xf]
      %v474 = vld [vmem:[%s1 + $0x17c] sm:$0xf]
      %v475 = vld [vmem:[%s1 + $0x180] sm:$0xf]
      %v476 = vld [vmem:[%s1 + $0x184] sm:$0xf]
      %v477 = vld [vmem:[%s1 + $0x188] sm:$0xf]
      %v478 = vld [vmem:[%s1 + $0x18c] sm:$0xf]
      %v479 = vld [vmem:[%s1 + $0x190] sm:$0xf]
      %v480 = vld [vmem:[%s1 + $0x194] sm:$0xf]
      %v481 = vld [vmem:[%s1 + $0x198] sm:$0xf]
      %v482 = vld [vmem:[%s1 + $0x19c] sm:$0xf]
      %v483 = vld [vmem:[%s1 + $0x1a0] sm:$0xf]
      %v484 = vld [vmem:[%s1 + $0x1a4] sm:$0xf]
      %v485 = vld [vmem:[%s1 + $0x1a8] sm:$0xf]
      %v486 = vld [vmem:[%s1 + $0x1ac] sm:$0xf]
      %v487 = vld [vmem:[%s1 + $0x1b0] sm:$0xf]
      %v488 = vld [vmem:[%s1 + $0x1b4] sm:$0xf]
      %v489 = vld [vmem:[%s1 + $0x1b8] sm:$0xf]
      %v490 = vld [vmem:[%s1 + $0x1bc] sm:$0xf]
      %v491 = vld [vmem:[%s1 + $0x1c0] sm:$0xf]
      %v492 = vld [vmem:[%s1 + $0x1c4] sm:$0xf]
      %v493 = vld [vmem:[%s1 + $0x1c8] sm:$0xf]
      %v494 = vld [vmem:[%s1 + $0x1cc] sm:$0xf]
      %v495 = vld [vmem:[%s1 + $0x1d0] sm:$0xf]
      %v496 = vld [vmem:[%s1 + $0x1d4] sm:$0xf]
      %v497 = vld [vmem:[%s1 + $0x1d8] sm:$0xf]
      %v498 = vld [vmem:[%s1 + $0x1dc] sm:$0xf]
      %v499 = vld [vmem:[%s1 + $0x1e0] sm:$0xf]
      %v500 = vld [vmem:[%s1 + $0x1e4] sm:$0xf]
      %v501 = vld [vmem:[%s1 + $0x1e8] sm:$0xf]
      %v502 = vld [vmem:[%s1 + $0x1ec] sm:$0xf]
      %v503 = vld [vmem:[%s1 + $0x1f0] sm:$0xf]
      %v504 = vld [vmem:[%s1 + $0x1f4] sm:$0xf]
      %v505 = vld [vmem:[%s1 + $0x1f8] sm:$0xf]
      %v506 = vld [vmem:[%s1 + $0x1fc] sm:$0xf]
      %v507 = vld [vmem:[%s1 + $0x200] sm:$0xf]
      %v508 = vld [vmem:[%s1 + $0x204] sm:$0xf]
      %v509 = vld [vmem:[%s1 + $0x208] sm:$0xf]
      %v510 = vld [vmem:[%s1 + $0x20c] sm:$0xf]
      %v511 = vld [vmem:[%s1 + $0x210] sm:$0xf]
      %v512 = vld [vmem:[%s1 + $0x214] sm:$0xf]
      %v513 = vld [vmem:[%s1 + $0x218] sm:$0xf]
      %v514 = vld [vmem:[%s1 + $0x21c] sm:$0xf]
      %v515 = vld [vmem:[%s1 + $0x220] sm:$0xf]
      %v516 = vld [vmem:[%s1 + $0x224] sm:$0xf]
      %v517 = vld [vmem:[%s1 + $0x228] sm:$0xf]
      %v518 = vld [vmem:[%s1 + $0x22c] sm:$0xf]
      %v519 = vld [vmem:[%s1 + $0x230] sm:$0xf]
      %v520 = vld [vmem:[%s1 + $0x234] sm:$0xf]
      %v521 = vld [vmem:[%s1 + $0x238] sm:$0xf]
      %v522 = vld [vmem:[%s1 + $0x23c] sm:$0xf]
      %v523 = vld [vmem:[%s1 + $0x240] sm:$0xf]
      %v524 = vld [vmem:[%s1 + $0x244] sm:$0xf]
      %v525 = vld [vmem:[%s1 + $0x248] sm:$0xf]
      %v526 = vld [vmem:[%s1 + $0x24c] sm:$0xf]
      %v527 = vld [vmem:[%s1 + $0x250] sm:$0xf]
      %v528 = vld [vmem:[%s1 + $0x254] sm:$0xf]
      %v529 = vld [vmem:[%s1 + $0x258] sm:$0xf]
      %v530 = vld [vmem:[%s1 + $0x25c] sm:$0xf]
      %v531 = vld [vmem:[%s1 + $0x260] sm:$0xf]
      %v532 = vld [vmem:[%s1 + $0x264] sm:$0xf]
      %v533 = vld [vmem:[%s1 + $0x268] sm:$0xf]
      %v534 = vld [vmem:[%s1 + $0x26c] sm:$0xf]
      %v535 = vld [vmem:[%s1 + $0x270] sm:$0xf]
      %v536 = vld [vmem:[%s1 + $0x274] sm:$0xf]
      %v537 = vld [vmem:[%s1 + $0x278] sm:$0xf]
      %v538 = vld [vmem:[%s1 + $0x27c] sm:$0xf]
      %v539 = vld [vmem:[%s2] sm:$0x1]
      %v541 = vlaneseq
      %v542 = vshrl.u32 %v541, 7
      %v543 = vsub.s32 0, %v542
      %v544 = vrot.slane %v539, %v543
      %v586 = vunpack.c.l.b16 %v339
      %v587 = vunpack.c.h.b16 %v339
      %v588 = vunpack.c.l.b16 %v340
      %v589 = vunpack.c.h.b16 %v340
      %v590 = vunpack.c.l.b16 %v341
      %v591 = vunpack.c.h.b16 %v341
      %v592 = vunpack.c.l.b16 %v342
      %v593 = vunpack.c.h.b16 %v342
      %v594 = vunpack.c.l.b16 %v343
      %v595 = vunpack.c.h.b16 %v343
      %v596 = vunpack.c.l.b16 %v344
      %v597 = vunpack.c.h.b16 %v344
      %v598 = vunpack.c.l.b16 %v345
      %v599 = vunpack.c.h.b16 %v345
      %v600 = vunpack.c.l.b16 %v346
      %v601 = vunpack.c.h.b16 %v346
      %v602 = vunpack.c.l.b16 %v347
      %v603 = vunpack.c.h.b16 %v347
      %v604 = vunpack.c.l.b16 %v348
      %v605 = vunpack.c.h.b16 %v348
      %v606 = vunpack.c.l.b16 %v349
      %v607 = vunpack.c.h.b16 %v349
      %v608 = vunpack.c.l.b16 %v350
      %v609 = vunpack.c.h.b16 %v350
      %v610 = vunpack.c.l.b16 %v351
      %v611 = vunpack.c.h.b16 %v351
      %v612 = vunpack.c.l.b16 %v352
      %v613 = vunpack.c.h.b16 %v352
      %v614 = vunpack.c.l.b16 %v353
      %v615 = vunpack.c.h.b16 %v353
      %v616 = vunpack.c.l.b16 %v354
      %v617 = vunpack.c.h.b16 %v354
      %v618 = vunpack.c.l.b16 %v355
      %v619 = vunpack.c.h.b16 %v355
      %v620 = vunpack.c.l.b16 %v356
      %v621 = vunpack.c.h.b16 %v356
      %v622 = vunpack.c.l.b16 %v357
      %v623 = vunpack.c.h.b16 %v357
      %v624 = vunpack.c.l.b16 %v358
      %v625 = vunpack.c.h.b16 %v358
      %v626 = vunpack.c.l.b16 %v359
      %v627 = vunpack.c.h.b16 %v359
      %v628 = vunpack.c.l.b16 %v360
      %v629 = vunpack.c.h.b16 %v360
      %v630 = vunpack.c.l.b16 %v361
      %v631 = vunpack.c.h.b16 %v361
      %v632 = vunpack.c.l.b16 %v362
      %v633 = vunpack.c.h.b16 %v362
      %v634 = vunpack.c.l.b16 %v363
      %v635 = vunpack.c.h.b16 %v363
      %v636 = vunpack.c.l.b16 %v364
      %v637 = vunpack.c.h.b16 %v364
      %v638 = vunpack.c.l.b16 %v365
      %v639 = vunpack.c.h.b16 %v365
      %v640 = vunpack.c.l.b16 %v366
      %v641 = vunpack.c.h.b16 %v366
      %v642 = vunpack.c.l.b16 %v367
      %v643 = vunpack.c.h.b16 %v367
      %v644 = vunpack.c.l.b16 %v368
      %v645 = vunpack.c.h.b16 %v368
      %v646 = vunpack.c.l.b16 %v369
      %v647 = vunpack.c.h.b16 %v369
      %v648 = vunpack.c.l.b16 %v370
      %v649 = vunpack.c.h.b16 %v370
      %v650 = vunpack.c.l.b16 %v371
      %v651 = vunpack.c.h.b16 %v371
      %v652 = vunpack.c.l.b16 %v372
      %v653 = vunpack.c.h.b16 %v372
      %v654 = vunpack.c.l.b16 %v373
      %v655 = vunpack.c.h.b16 %v373
      %v656 = vunpack.c.l.b16 %v374
      %v657 = vunpack.c.h.b16 %v374
      %v658 = vunpack.c.l.b16 %v375
      %v659 = vunpack.c.h.b16 %v375
      %v660 = vunpack.c.l.b16 %v376
      %v661 = vunpack.c.h.b16 %v376
      %v662 = vunpack.c.l.b16 %v377
      %v663 = vunpack.c.h.b16 %v377
      %v664 = vunpack.c.l.b16 %v378
      %v665 = vunpack.c.h.b16 %v378
      %v666 = vpack.c.b16 %v596, %v586
      %v667 = vpack.c.b16 %v597, %v587
      %v668 = vpack.c.b16 %v598, %v588
      %v669 = vpack.c.b16 %v599, %v589
      %v670 = vpack.c.b16 %v600, %v590
      %v671 = vpack.c.b16 %v601, %v591
      %v672 = vpack.c.b16 %v602, %v592
      %v673 = vpack.c.b16 %v603, %v593
      %v674 = vpack.c.b16 %v604, %v594
      %v675 = vpack.c.b16 %v605, %v595
      %v676 = vpack.c.b16 %v616, %v606
      %v677 = vpack.c.b16 %v617, %v607
      %v678 = vpack.c.b16 %v618, %v608
      %v679 = vpack.c.b16 %v619, %v609
      %v680 = vpack.c.b16 %v620, %v610
      %v681 = vpack.c.b16 %v621, %v611
      %v682 = vpack.c.b16 %v622, %v612
      %v683 = vpack.c.b16 %v623, %v613
      %v684 = vpack.c.b16 %v624, %v614
      %v685 = vpack.c.b16 %v625, %v615
      %v686 = vpack.c.b16 %v636, %v626
      %v687 = vpack.c.b16 %v637, %v627
      %v688 = vpack.c.b16 %v638, %v628
      %v689 = vpack.c.b16 %v639, %v629
      %v690 = vpack.c.b16 %v640, %v630
      %v691 = vpack.c.b16 %v641, %v631
      %v692 = vpack.c.b16 %v642, %v632
      %v693 = vpack.c.b16 %v643, %v633
      %v694 = vpack.c.b16 %v644, %v634
      %v695 = vpack.c.b16 %v645, %v635
      %v696 = vpack.c.b16 %v656, %v646
      %v697 = vpack.c.b16 %v657, %v647
      %v698 = vpack.c.b16 %v658, %v648
      %v699 = vpack.c.b16 %v659, %v649
      %v700 = vpack.c.b16 %v660, %v650
      %v701 = vpack.c.b16 %v661, %v651
      %v702 = vpack.c.b16 %v662, %v652
      %v703 = vpack.c.b16 %v663, %v653
      %v704 = vpack.c.b16 %v664, %v654
      %v705 = vpack.c.b16 %v665, %v655
      %v906 = vunpack.c.l.b16 %v379
      %v907 = vunpack.c.l.b16 %v380
      %v908 = vunpack.c.l.b16 %v381
      %v909 = vunpack.c.l.b16 %v382
      %v910 = vunpack.c.l.b16 %v383
      %v911 = vunpack.c.l.b16 %v384
      %v912 = vunpack.c.l.b16 %v385
      %v913 = vunpack.c.l.b16 %v386
      %v914 = vunpack.c.l.b16 %v387
      %v915 = vunpack.c.l.b16 %v388
      %v916 = vunpack.c.l.b16 %v389
      %v917 = vunpack.c.l.b16 %v390
      %v918 = vunpack.c.l.b16 %v391
      %v919 = vunpack.c.l.b16 %v392
      %v920 = vunpack.c.l.b16 %v393
      %v921 = vunpack.c.l.b16 %v394
      %v922 = vunpack.c.l.b16 %v395
      %v923 = vunpack.c.l.b16 %v396
      %v924 = vunpack.c.l.b16 %v397
      %v925 = vunpack.c.l.b16 %v398
      %v926 = vunpack.c.l.b16 %v399
      %v927 = vunpack.c.l.b16 %v400
      %v928 = vunpack.c.l.b16 %v401
      %v929 = vunpack.c.l.b16 %v402
      %v930 = vunpack.c.l.b16 %v403
      %v931 = vunpack.c.l.b16 %v404
      %v932 = vunpack.c.l.b16 %v405
      %v933 = vunpack.c.l.b16 %v406
      %v934 = vunpack.c.l.b16 %v407
      %v935 = vunpack.c.l.b16 %v408
      %v936 = vunpack.c.l.b16 %v409
      %v937 = vunpack.c.l.b16 %v410
      %v938 = vunpack.c.l.b16 %v411
      %v939 = vunpack.c.l.b16 %v412
      %v940 = vunpack.c.l.b16 %v413
      %v941 = vunpack.c.l.b16 %v414
      %v942 = vunpack.c.l.b16 %v415
      %v943 = vunpack.c.l.b16 %v416
      %v944 = vunpack.c.l.b16 %v417
      %v945 = vunpack.c.l.b16 %v418
      %v946 = vunpack.c.l.b16 %v419
      %v947 = vunpack.c.l.b16 %v420
      %v948 = vunpack.c.l.b16 %v421
      %v949 = vunpack.c.l.b16 %v422
      %v950 = vunpack.c.l.b16 %v423
      %v951 = vunpack.c.l.b16 %v424
      %v952 = vunpack.c.l.b16 %v425
      %v953 = vunpack.c.l.b16 %v426
      %v954 = vunpack.c.l.b16 %v427
      %v955 = vunpack.c.l.b16 %v428
      %v956 = vunpack.c.l.b16 %v429
      %v957 = vunpack.c.l.b16 %v430
      %v958 = vunpack.c.l.b16 %v431
      %v959 = vunpack.c.l.b16 %v432
      %v960 = vunpack.c.l.b16 %v433
      %v961 = vunpack.c.l.b16 %v434
      %v962 = vunpack.c.l.b16 %v435
      %v963 = vunpack.c.l.b16 %v436
      %v964 = vunpack.c.l.b16 %v437
      %v965 = vunpack.c.l.b16 %v438
      %v966 = vunpack.c.l.b16 %v439
      %v967 = vunpack.c.l.b16 %v440
      %v968 = vunpack.c.l.b16 %v441
      %v969 = vunpack.c.l.b16 %v442
      %v970 = vunpack.c.l.b16 %v443
      %v971 = vunpack.c.l.b16 %v444
      %v972 = vunpack.c.l.b16 %v445
      %v973 = vunpack.c.l.b16 %v446
      %v974 = vunpack.c.l.b16 %v447
      %v975 = vunpack.c.l.b16 %v448
      %v976 = vunpack.c.l.b16 %v449
      %v977 = vunpack.c.l.b16 %v450
      %v978 = vunpack.c.l.b16 %v451
      %v979 = vunpack.c.l.b16 %v452
      %v980 = vunpack.c.l.b16 %v453
      %v981 = vunpack.c.l.b16 %v454
      %v982 = vunpack.c.l.b16 %v455
      %v983 = vunpack.c.l.b16 %v456
      %v984 = vunpack.c.l.b16 %v457
      %v985 = vunpack.c.l.b16 %v458
      %v986 = vunpack.c.l.b16 %v459
      %v987 = vunpack.c.l.b16 %v460
      %v988 = vunpack.c.l.b16 %v461
      %v989 = vunpack.c.l.b16 %v462
      %v990 = vunpack.c.l.b16 %v463
      %v991 = vunpack.c.l.b16 %v464
      %v992 = vunpack.c.l.b16 %v465
      %v993 = vunpack.c.l.b16 %v466
      %v994 = vunpack.c.l.b16 %v467
      %v995 = vunpack.c.l.b16 %v468
      %v996 = vunpack.c.l.b16 %v469
      %v997 = vunpack.c.l.b16 %v470
      %v998 = vunpack.c.l.b16 %v471
      %v999 = vunpack.c.l.b16 %v472
      %v1000 = vunpack.c.l.b16 %v473
      %v1001 = vunpack.c.l.b16 %v474
      %v1002 = vunpack.c.l.b16 %v475
      %v1003 = vunpack.c.l.b16 %v476
      %v1004 = vunpack.c.l.b16 %v477
      %v1005 = vunpack.c.l.b16 %v478
      %v1006 = vunpack.c.l.b16 %v479
      %v1007 = vunpack.c.l.b16 %v480
      %v1008 = vunpack.c.l.b16 %v481
      %v1009 = vunpack.c.l.b16 %v482
      %v1010 = vunpack.c.l.b16 %v483
      %v1011 = vunpack.c.l.b16 %v484
      %v1012 = vunpack.c.l.b16 %v485
      %v1013 = vunpack.c.l.b16 %v486
      %v1014 = vunpack.c.l.b16 %v487
      %v1015 = vunpack.c.l.b16 %v488
      %v1016 = vunpack.c.l.b16 %v489
      %v1017 = vunpack.c.l.b16 %v490
      %v1018 = vunpack.c.l.b16 %v491
      %v1019 = vunpack.c.l.b16 %v492
      %v1020 = vunpack.c.l.b16 %v493
      %v1021 = vunpack.c.l.b16 %v494
      %v1022 = vunpack.c.l.b16 %v495
      %v1023 = vunpack.c.l.b16 %v496
      %v1024 = vunpack.c.l.b16 %v497
      %v1025 = vunpack.c.l.b16 %v498
      %v1026 = vunpack.c.l.b16 %v499
      %v1027 = vunpack.c.l.b16 %v500
      %v1028 = vunpack.c.l.b16 %v501
      %v1029 = vunpack.c.l.b16 %v502
      %v1030 = vunpack.c.l.b16 %v503
      %v1031 = vunpack.c.l.b16 %v504
      %v1032 = vunpack.c.l.b16 %v505
      %v1033 = vunpack.c.l.b16 %v506
      %v1034 = vunpack.c.l.b16 %v507
      %v1035 = vunpack.c.l.b16 %v508
      %v1036 = vunpack.c.l.b16 %v509
      %v1037 = vunpack.c.l.b16 %v510
      %v1038 = vunpack.c.l.b16 %v511
      %v1039 = vunpack.c.l.b16 %v512
      %v1040 = vunpack.c.l.b16 %v513
      %v1041 = vunpack.c.l.b16 %v514
      %v1042 = vunpack.c.l.b16 %v515
      %v1043 = vunpack.c.l.b16 %v516
      %v1044 = vunpack.c.l.b16 %v517
      %v1045 = vunpack.c.l.b16 %v518
      %v1046 = vunpack.c.l.b16 %v519
      %v1047 = vunpack.c.l.b16 %v520
      %v1048 = vunpack.c.l.b16 %v521
      %v1049 = vunpack.c.l.b16 %v522
      %v1050 = vunpack.c.l.b16 %v523
      %v1051 = vunpack.c.l.b16 %v524
      %v1052 = vunpack.c.l.b16 %v525
      %v1053 = vunpack.c.l.b16 %v526
      %v1054 = vunpack.c.l.b16 %v527
      %v1055 = vunpack.c.l.b16 %v528
      %v1056 = vunpack.c.l.b16 %v529
      %v1057 = vunpack.c.l.b16 %v530
      %v1058 = vunpack.c.l.b16 %v531
      %v1059 = vunpack.c.l.b16 %v532
      %v1060 = vunpack.c.l.b16 %v533
      %v1061 = vunpack.c.l.b16 %v534
      %v1062 = vunpack.c.l.b16 %v535
      %v1063 = vunpack.c.l.b16 %v536
      %v1064 = vunpack.c.l.b16 %v537
      %v1065 = vunpack.c.l.b16 %v538
      %v1066 = vpack.c.b16 %v907, %v906
      %v1067 = vpack.c.b16 %v909, %v908
      %v1068 = vpack.c.b16 %v911, %v910
      %v1069 = vpack.c.b16 %v913, %v912
      %v1070 = vpack.c.b16 %v915, %v914
      %v1071 = vpack.c.b16 %v917, %v916
      %v1072 = vpack.c.b16 %v919, %v918
      %v1073 = vpack.c.b16 %v921, %v920
      %v1074 = vpack.c.b16 %v923, %v922
      %v1075 = vpack.c.b16 %v925, %v924
      %v1076 = vpack.c.b16 %v927, %v926
      %v1077 = vpack.c.b16 %v929, %v928
      %v1078 = vpack.c.b16 %v931, %v930
      %v1079 = vpack.c.b16 %v933, %v932
      %v1080 = vpack.c.b16 %v935, %v934
      %v1081 = vpack.c.b16 %v937, %v936
      %v1082 = vpack.c.b16 %v939, %v938
      %v1083 = vpack.c.b16 %v941, %v940
      %v1084 = vpack.c.b16 %v943, %v942
      %v1085 = vpack.c.b16 %v945, %v944
      %v1086 = vpack.c.b16 %v947, %v946
      %v1087 = vpack.c.b16 %v949, %v948
      %v1088 = vpack.c.b16 %v951, %v950
      %v1089 = vpack.c.b16 %v953, %v952
      %v1090 = vpack.c.b16 %v955, %v954
      %v1091 = vpack.c.b16 %v957, %v956
      %v1092 = vpack.c.b16 %v959, %v958
      %v1093 = vpack.c.b16 %v961, %v960
      %v1094 = vpack.c.b16 %v963, %v962
      %v1095 = vpack.c.b16 %v965, %v964
      %v1096 = vpack.c.b16 %v967, %v966
      %v1097 = vpack.c.b16 %v969, %v968
      %v1098 = vpack.c.b16 %v971, %v970
      %v1099 = vpack.c.b16 %v973, %v972
      %v1100 = vpack.c.b16 %v975, %v974
      %v1101 = vpack.c.b16 %v977, %v976
      %v1102 = vpack.c.b16 %v979, %v978
      %v1103 = vpack.c.b16 %v981, %v980
      %v1104 = vpack.c.b16 %v983, %v982
      %v1105 = vpack.c.b16 %v985, %v984
      %v1106 = vpack.c.b16 %v987, %v986
      %v1107 = vpack.c.b16 %v989, %v988
      %v1108 = vpack.c.b16 %v991, %v990
      %v1109 = vpack.c.b16 %v993, %v992
      %v1110 = vpack.c.b16 %v995, %v994
      %v1111 = vpack.c.b16 %v997, %v996
      %v1112 = vpack.c.b16 %v999, %v998
      %v1113 = vpack.c.b16 %v1001, %v1000
      %v1114 = vpack.c.b16 %v1003, %v1002
      %v1115 = vpack.c.b16 %v1005, %v1004
      %v1116 = vpack.c.b16 %v1007, %v1006
      %v1117 = vpack.c.b16 %v1009, %v1008
      %v1118 = vpack.c.b16 %v1011, %v1010
      %v1119 = vpack.c.b16 %v1013, %v1012
      %v1120 = vpack.c.b16 %v1015, %v1014
      %v1121 = vpack.c.b16 %v1017, %v1016
      %v1122 = vpack.c.b16 %v1019, %v1018
      %v1123 = vpack.c.b16 %v1021, %v1020
      %v1124 = vpack.c.b16 %v1023, %v1022
      %v1125 = vpack.c.b16 %v1025, %v1024
      %v1126 = vpack.c.b16 %v1027, %v1026
      %v1127 = vpack.c.b16 %v1029, %v1028
      %v1128 = vpack.c.b16 %v1031, %v1030
      %v1129 = vpack.c.b16 %v1033, %v1032
      %v1130 = vpack.c.b16 %v1035, %v1034
      %v1131 = vpack.c.b16 %v1037, %v1036
      %v1132 = vpack.c.b16 %v1039, %v1038
      %v1133 = vpack.c.b16 %v1041, %v1040
      %v1134 = vpack.c.b16 %v1043, %v1042
      %v1135 = vpack.c.b16 %v1045, %v1044
      %v1136 = vpack.c.b16 %v1047, %v1046
      %v1137 = vpack.c.b16 %v1049, %v1048
      %v1138 = vpack.c.b16 %v1051, %v1050
      %v1139 = vpack.c.b16 %v1053, %v1052
      %v1140 = vpack.c.b16 %v1055, %v1054
      %v1141 = vpack.c.b16 %v1057, %v1056
      %v1142 = vpack.c.b16 %v1059, %v1058
      %v1143 = vpack.c.b16 %v1061, %v1060
      %v1144 = vpack.c.b16 %v1063, %v1062
      %v1145 = vpack.c.b16 %v1065, %v1064
      %1226 = vmatprep.subr.bf16.mxu0 0
      %1227 = vmatpush1.bf16.msra.mxu0 %v1073
      %1228 = vmatprep.subr.bf16.mxu0 0
      %1229 = vmatpush1.bf16.msra.mxu0 %v1072
      %1230 = vmatprep.subr.bf16.mxu0 0
      %1231 = vmatpush1.bf16.msra.mxu0 %v1071
      %1232 = vmatprep.subr.bf16.mxu0 0
      %1233 = vmatpush1.bf16.msra.mxu0 %v1070
      %1234 = vmatprep.subr.bf16.mxu0 0
      %1235 = vmatpush1.bf16.msra.mxu0 %v1069
      %1236 = vmatprep.subr.bf16.mxu0 0
      %1237 = vmatpush1.bf16.msra.mxu0 %v1068
      %1238 = vmatprep.subr.bf16.mxu0 0
      %1239 = vmatpush1.bf16.msra.mxu0 %v1067
      %1240 = vmatprep.subr.bf16.mxu0 0
      %1241 = vmatpush1.bf16.msra.mxu0 %v1066
      %1242 = vmatprep.subr.bf16.mxu0 0
      %1243 = vmatpush2.bf16.msra.mxu0 %v1081
      %1244 = vmatprep.subr.bf16.mxu0 0
      %1245 = vmatpush2.bf16.msra.mxu0 %v1080
      %1246 = vmatprep.subr.bf16.mxu0 0
      %1247 = vmatpush2.bf16.msra.mxu0 %v1079
      %1248 = vmatprep.subr.bf16.mxu0 0
      %1249 = vmatpush2.bf16.msra.mxu0 %v1078
      %1250 = vmatprep.subr.bf16.mxu0 0
      %1251 = vmatpush2.bf16.msra.mxu0 %v1077
      %1252 = vmatprep.subr.bf16.mxu0 0
      %1253 = vmatpush2.bf16.msra.mxu0 %v1076
      %1254 = vmatprep.subr.bf16.mxu0 0
      %1255 = vmatpush2.bf16.msra.mxu0 %v1075
      %1256 = vmatprep.subr.bf16.mxu0 0
      %1257 = vmatpush2.bf16.msra.mxu0 %v1074
      %1258 = vmatprep.mubr.bf16.mxu0 %v667
      %1259 = vmatmul.mubr.bf16.gmra.mxu0 %v666
      %v1260 = vpop.f32.mrf.mxu0
      %v1261 = vadd.f32 %v544, %v1260
      %v1262 = vpop.f32.mrf.mxu0
      %v1263 = vpop.f32.mrf.mxu0
      %v1264 = vadd.f32 %v544, %v1263
      %v1265 = vpop.f32.mrf.mxu0
      %1266 = vmatprep.mubr.bf16.mxu0 %v677
      %1267 = vmatmul.mubr.bf16.gmra.mxu0 %v676
      %v1268 = vpop.f32.mrf.mxu0
      %v1269 = vadd.f32 %v544, %v1268
      %v1270 = vpop.f32.mrf.mxu0
      %v1271 = vpop.f32.mrf.mxu0
      %v1272 = vadd.f32 %v544, %v1271
      %v1273 = vpop.f32.mrf.mxu0
      %1274 = vmatprep.mubr.bf16.mxu0 %v687
      %1275 = vmatmul.mubr.bf16.gmra.mxu0 %v686
      %v1276 = vpop.f32.mrf.mxu0
      %v1277 = vadd.f32 %v544, %v1276
      %v1278 = vpop.f32.mrf.mxu0
      %v1279 = vpop.f32.mrf.mxu0
      %v1280 = vadd.f32 %v544, %v1279
      %v1281 = vpop.f32.mrf.mxu0
      %1282 = vmatprep.mubr.bf16.mxu0 %v697
      %1283 = vmatmul.mubr.bf16.gmra.mxu0 %v696
      %v1284 = vpop.f32.mrf.mxu0
      %v1285 = vadd.f32 %v544, %v1284
      %v1286 = vpop.f32.mrf.mxu0
      %v1287 = vpop.f32.mrf.mxu0
      %v1288 = vadd.f32 %v544, %v1287
      %v1289 = vpop.f32.mrf.mxu0
      %1290 = vdwg.mxu0
      %1291 = vmatprep.subr.bf16.mxu0 0
      %1292 = vmatpush1.bf16.msra.mxu0 %v1089
      %1293 = vmatprep.subr.bf16.mxu0 0
      %1294 = vmatpush1.bf16.msra.mxu0 %v1088
      %1295 = vmatprep.subr.bf16.mxu0 0
      %1296 = vmatpush1.bf16.msra.mxu0 %v1087
      %1297 = vmatprep.subr.bf16.mxu0 0
      %1298 = vmatpush1.bf16.msra.mxu0 %v1086
      %1299 = vmatprep.subr.bf16.mxu0 0
      %1300 = vmatpush1.bf16.msra.mxu0 %v1085
      %1301 = vmatprep.subr.bf16.mxu0 0
      %1302 = vmatpush1.bf16.msra.mxu0 %v1084
      %1303 = vmatprep.subr.bf16.mxu0 0
      %1304 = vmatpush1.bf16.msra.mxu0 %v1083
      %1305 = vmatprep.subr.bf16.mxu0 0
      %1306 = vmatpush1.bf16.msra.mxu0 %v1082
      %1307 = vmatprep.subr.bf16.mxu0 0
      %1308 = vmatpush2.bf16.msra.mxu0 %v1097
      %1309 = vmatprep.subr.bf16.mxu0 0
      %1310 = vmatpush2.bf16.msra.mxu0 %v1096
      %1311 = vmatprep.subr.bf16.mxu0 0
      %1312 = vmatpush2.bf16.msra.mxu0 %v1095
      %1313 = vmatprep.subr.bf16.mxu0 0
      %1314 = vmatpush2.bf16.msra.mxu0 %v1094
      %1315 = vmatprep.subr.bf16.mxu0 0
      %1316 = vmatpush2.bf16.msra.mxu0 %v1093
      %1317 = vmatprep.subr.bf16.mxu0 0
      %1318 = vmatpush2.bf16.msra.mxu0 %v1092
      %1319 = vmatprep.subr.bf16.mxu0 0
      %1320 = vmatpush2.bf16.msra.mxu0 %v1091
      %1321 = vmatprep.subr.bf16.mxu0 0
      %1322 = vmatpush2.bf16.msra.mxu0 %v1090
      %1323 = vmatprep.mubr.bf16.mxu0 %v669
      %1324 = vmatmul.mubr.bf16.gmra.mxu0 %v668
      %v1325 = vpop.f32.mrf.mxu0
      %v1326 = vadd.f32 %v1261, %v1325
      %v1327 = vpop.f32.mrf.mxu0
      %v1328 = vpop.f32.mrf.mxu0
      %v1329 = vadd.f32 %v1264, %v1328
      %v1330 = vpop.f32.mrf.mxu0
      %1331 = vmatprep.mubr.bf16.mxu0 %v679
      %1332 = vmatmul.mubr.bf16.gmra.mxu0 %v678
      %v1333 = vpop.f32.mrf.mxu0
      %v1334 = vadd.f32 %v1269, %v1333
      %v1335 = vpop.f32.mrf.mxu0
      %v1336 = vpop.f32.mrf.mxu0
      %v1337 = vadd.f32 %v1272, %v1336
      %v1338 = vpop.f32.mrf.mxu0
      %1339 = vmatprep.mubr.bf16.mxu0 %v689
      %1340 = vmatmul.mubr.bf16.gmra.mxu0 %v688
      %v1341 = vpop.f32.mrf.mxu0
      %v1342 = vadd.f32 %v1277, %v1341
      %v1343 = vpop.f32.mrf.mxu0
      %v1344 = vpop.f32.mrf.mxu0
      %v1345 = vadd.f32 %v1280, %v1344
      %v1346 = vpop.f32.mrf.mxu0
      %1347 = vmatprep.mubr.bf16.mxu0 %v699
      %1348 = vmatmul.mubr.bf16.gmra.mxu0 %v698
      %v1349 = vpop.f32.mrf.mxu0
      %v1350 = vadd.f32 %v1285, %v1349
      %v1351 = vpop.f32.mrf.mxu0
      %v1352 = vpop.f32.mrf.mxu0
      %v1353 = vadd.f32 %v1288, %v1352
      %v1354 = vpop.f32.mrf.mxu0
      %1355 = vdwg.mxu0
      %1356 = vmatprep.subr.bf16.mxu0 0
      %1357 = vmatpush1.bf16.msra.mxu0 %v1105
      %1358 = vmatprep.subr.bf16.mxu0 0
      %1359 = vmatpush1.bf16.msra.mxu0 %v1104
      %1360 = vmatprep.subr.bf16.mxu0 0
      %1361 = vmatpush1.bf16.msra.mxu0 %v1103
      %1362 = vmatprep.subr.bf16.mxu0 0
      %1363 = vmatpush1.bf16.msra.mxu0 %v1102
      %1364 = vmatprep.subr.bf16.mxu0 0
      %1365 = vmatpush1.bf16.msra.mxu0 %v1101
      %1366 = vmatprep.subr.bf16.mxu0 0
      %1367 = vmatpush1.bf16.msra.mxu0 %v1100
      %1368 = vmatprep.subr.bf16.mxu0 0
      %1369 = vmatpush1.bf16.msra.mxu0 %v1099
      %1370 = vmatprep.subr.bf16.mxu0 0
      %1371 = vmatpush1.bf16.msra.mxu0 %v1098
      %1372 = vmatprep.subr.bf16.mxu0 0
      %1373 = vmatpush2.bf16.msra.mxu0 %v1113
      %1374 = vmatprep.subr.bf16.mxu0 0
      %1375 = vmatpush2.bf16.msra.mxu0 %v1112
      %1376 = vmatprep.subr.bf16.mxu0 0
      %1377 = vmatpush2.bf16.msra.mxu0 %v1111
      %1378 = vmatprep.subr.bf16.mxu0 0
      %1379 = vmatpush2.bf16.msra.mxu0 %v1110
      %1380 = vmatprep.subr.bf16.mxu0 0
      %1381 = vmatpush2.bf16.msra.mxu0 %v1109
      %1382 = vmatprep.subr.bf16.mxu0 0
      %1383 = vmatpush2.bf16.msra.mxu0 %v1108
      %1384 = vmatprep.subr.bf16.mxu0 0
      %1385 = vmatpush2.bf16.msra.mxu0 %v1107
      %1386 = vmatprep.subr.bf16.mxu0 0
      %1387 = vmatpush2.bf16.msra.mxu0 %v1106
      %1388 = vmatprep.mubr.bf16.mxu0 %v671
      %1389 = vmatmul.mubr.bf16.gmra.mxu0 %v670
      %v1390 = vpop.f32.mrf.mxu0
      %v1391 = vadd.f32 %v1326, %v1390
      %v1392 = vpop.f32.mrf.mxu0
      %v1393 = vpop.f32.mrf.mxu0
      %v1394 = vadd.f32 %v1329, %v1393
      %v1395 = vpop.f32.mrf.mxu0
      %1396 = vmatprep.mubr.bf16.mxu0 %v681
      %1397 = vmatmul.mubr.bf16.gmra.mxu0 %v680
      %v1398 = vpop.f32.mrf.mxu0
      %v1399 = vadd.f32 %v1334, %v1398
      %v1400 = vpop.f32.mrf.mxu0
      %v1401 = vpop.f32.mrf.mxu0
      %v1402 = vadd.f32 %v1337, %v1401
      %v1403 = vpop.f32.mrf.mxu0
      %1404 = vmatprep.mubr.bf16.mxu0 %v691
      %1405 = vmatmul.mubr.bf16.gmra.mxu0 %v690
      %v1406 = vpop.f32.mrf.mxu0
      %v1407 = vadd.f32 %v1342, %v1406
      %v1408 = vpop.f32.mrf.mxu0
      %v1409 = vpop.f32.mrf.mxu0
      %v1410 = vadd.f32 %v1345, %v1409
      %v1411 = vpop.f32.mrf.mxu0
      %1412 = vmatprep.mubr.bf16.mxu0 %v701
      %1413 = vmatmul.mubr.bf16.gmra.mxu0 %v700
      %v1414 = vpop.f32.mrf.mxu0
      %v1415 = vadd.f32 %v1350, %v1414
      %v1416 = vpop.f32.mrf.mxu0
      %v1417 = vpop.f32.mrf.mxu0
      %v1418 = vadd.f32 %v1353, %v1417
      %v1419 = vpop.f32.mrf.mxu0
      %1420 = vdwg.mxu0
      %1421 = vmatprep.subr.bf16.mxu0 0
      %1422 = vmatpush1.bf16.msra.mxu0 %v1121
      %1423 = vmatprep.subr.bf16.mxu0 0
      %1424 = vmatpush1.bf16.msra.mxu0 %v1120
      %1425 = vmatprep.subr.bf16.mxu0 0
      %1426 = vmatpush1.bf16.msra.mxu0 %v1119
      %1427 = vmatprep.subr.bf16.mxu0 0
      %1428 = vmatpush1.bf16.msra.mxu0 %v1118
      %1429 = vmatprep.subr.bf16.mxu0 0
      %1430 = vmatpush1.bf16.msra.mxu0 %v1117
      %1431 = vmatprep.subr.bf16.mxu0 0
      %1432 = vmatpush1.bf16.msra.mxu0 %v1116
      %1433 = vmatprep.subr.bf16.mxu0 0
      %1434 = vmatpush1.bf16.msra.mxu0 %v1115
      %1435 = vmatprep.subr.bf16.mxu0 0
      %1436 = vmatpush1.bf16.msra.mxu0 %v1114
      %1437 = vmatprep.subr.bf16.mxu0 0
      %1438 = vmatpush2.bf16.msra.mxu0 %v1129
      %1439 = vmatprep.subr.bf16.mxu0 0
      %1440 = vmatpush2.bf16.msra.mxu0 %v1128
      %1441 = vmatprep.subr.bf16.mxu0 0
      %1442 = vmatpush2.bf16.msra.mxu0 %v1127
      %1443 = vmatprep.subr.bf16.mxu0 0
      %1444 = vmatpush2.bf16.msra.mxu0 %v1126
      %1445 = vmatprep.subr.bf16.mxu0 0
      %1446 = vmatpush2.bf16.msra.mxu0 %v1125
      %1447 = vmatprep.subr.bf16.mxu0 0
      %1448 = vmatpush2.bf16.msra.mxu0 %v1124
      %1449 = vmatprep.subr.bf16.mxu0 0
      %1450 = vmatpush2.bf16.msra.mxu0 %v1123
      %1451 = vmatprep.subr.bf16.mxu0 0
      %1452 = vmatpush2.bf16.msra.mxu0 %v1122
      %1453 = vmatprep.mubr.bf16.mxu0 %v673
      %1454 = vmatmul.mubr.bf16.gmra.mxu0 %v672
      %v1455 = vpop.f32.mrf.mxu0
      %v1456 = vadd.f32 %v1391, %v1455
      %v1457 = vpop.f32.mrf.mxu0
      %v1458 = vpop.f32.mrf.mxu0
      %v1459 = vadd.f32 %v1394, %v1458
      %v1460 = vpop.f32.mrf.mxu0
      %1461 = vmatprep.mubr.bf16.mxu0 %v683
      %1462 = vmatmul.mubr.bf16.gmra.mxu0 %v682
      %v1463 = vpop.f32.mrf.mxu0
      %v1464 = vadd.f32 %v1399, %v1463
      %v1465 = vpop.f32.mrf.mxu0
      %v1466 = vpop.f32.mrf.mxu0
      %v1467 = vadd.f32 %v1402, %v1466
      %v1468 = vpop.f32.mrf.mxu0
      %1469 = vmatprep.mubr.bf16.mxu0 %v693
      %1470 = vmatmul.mubr.bf16.gmra.mxu0 %v692
      %v1471 = vpop.f32.mrf.mxu0
      %v1472 = vadd.f32 %v1407, %v1471
      %v1473 = vpop.f32.mrf.mxu0
      %v1474 = vpop.f32.mrf.mxu0
      %v1475 = vadd.f32 %v1410, %v1474
      %v1476 = vpop.f32.mrf.mxu0
      %1477 = vmatprep.mubr.bf16.mxu0 %v703
      %1478 = vmatmul.mubr.bf16.gmra.mxu0 %v702
      %v1479 = vpop.f32.mrf.mxu0
      %v1480 = vadd.f32 %v1415, %v1479
      %v1481 = vpop.f32.mrf.mxu0
      %v1482 = vpop.f32.mrf.mxu0
      %v1483 = vadd.f32 %v1418, %v1482
      %v1484 = vpop.f32.mrf.mxu0
      %1485 = vdwg.mxu0
      %1486 = vmatprep.subr.bf16.mxu0 0
      %1487 = vmatpush1.bf16.msra.mxu0 %v1137
      %1488 = vmatprep.subr.bf16.mxu0 0
      %1489 = vmatpush1.bf16.msra.mxu0 %v1136
      %1490 = vmatprep.subr.bf16.mxu0 0
      %1491 = vmatpush1.bf16.msra.mxu0 %v1135
      %1492 = vmatprep.subr.bf16.mxu0 0
      %1493 = vmatpush1.bf16.msra.mxu0 %v1134
      %1494 = vmatprep.subr.bf16.mxu0 0
      %1495 = vmatpush1.bf16.msra.mxu0 %v1133
      %1496 = vmatprep.subr.bf16.mxu0 0
      %1497 = vmatpush1.bf16.msra.mxu0 %v1132
      %1498 = vmatprep.subr.bf16.mxu0 0
      %1499 = vmatpush1.bf16.msra.mxu0 %v1131
      %1500 = vmatprep.subr.bf16.mxu0 0
      %1501 = vmatpush1.bf16.msra.mxu0 %v1130
      %1502 = vmatprep.subr.bf16.mxu0 0
      %1503 = vmatpush2.bf16.msra.mxu0 %v1145
      %1504 = vmatprep.subr.bf16.mxu0 0
      %1505 = vmatpush2.bf16.msra.mxu0 %v1144
      %1506 = vmatprep.subr.bf16.mxu0 0
      %1507 = vmatpush2.bf16.msra.mxu0 %v1143
      %1508 = vmatprep.subr.bf16.mxu0 0
      %1509 = vmatpush2.bf16.msra.mxu0 %v1142
      %1510 = vmatprep.subr.bf16.mxu0 0
      %1511 = vmatpush2.bf16.msra.mxu0 %v1141
      %1512 = vmatprep.subr.bf16.mxu0 0
      %1513 = vmatpush2.bf16.msra.mxu0 %v1140
      %1514 = vmatprep.subr.bf16.mxu0 0
      %1515 = vmatpush2.bf16.msra.mxu0 %v1139
      %1516 = vmatprep.subr.bf16.mxu0 0
      %1517 = vmatpush2.bf16.msra.mxu0 %v1138
      %1518 = vmatprep.mubr.bf16.mxu0 %v675
      %1519 = vmatmul.mubr.bf16.gmra.mxu0 %v674
      %v1520 = vpop.f32.mrf.mxu0
      %v1521 = vadd.f32 %v1456, %v1520
      %v1522 = vpop.f32.mrf.mxu0
      %v1523 = vpop.f32.mrf.mxu0
      %v1524 = vadd.f32 %v1459, %v1523
      %v1525 = vpop.f32.mrf.mxu0
      %1526 = vmatprep.mubr.bf16.mxu0 %v685
      %1527 = vmatmul.mubr.bf16.gmra.mxu0 %v684
      %v1528 = vpop.f32.mrf.mxu0
      %v1529 = vadd.f32 %v1464, %v1528
      %v1530 = vpop.f32.mrf.mxu0
      %v1531 = vpop.f32.mrf.mxu0
      %v1532 = vadd.f32 %v1467, %v1531
      %v1533 = vpop.f32.mrf.mxu0
      %1534 = vmatprep.mubr.bf16.mxu0 %v695
      %1535 = vmatmul.mubr.bf16.gmra.mxu0 %v694
      %v1536 = vpop.f32.mrf.mxu0
      %v1537 = vadd.f32 %v1472, %v1536
      %v1538 = vpop.f32.mrf.mxu0
      %v1539 = vpop.f32.mrf.mxu0
      %v1540 = vadd.f32 %v1475, %v1539
      %v1541 = vpop.f32.mrf.mxu0
      %1542 = vmatprep.mubr.bf16.mxu0 %v705
      %1543 = vmatmul.mubr.bf16.gmra.mxu0 %v704
      %v1544 = vpop.f32.mrf.mxu0
      %v1545 = vadd.f32 %v1480, %v1544
      %v1546 = vpop.f32.mrf.mxu0
      %v1547 = vpop.f32.mrf.mxu0
      %v1548 = vadd.f32 %v1483, %v1547
      %v1549 = vpop.f32.mrf.mxu0
      %1550 = vdwg.mxu0
      %vm1551 = vcmp.gt.f32.partialorder %v1521, 0.0
      %vm1552 = vcmp.gt.f32.partialorder %v1524, 0.0
      %vm1553 = vcmp.gt.f32.partialorder %v1529, 0.0
      %vm1554 = vcmp.gt.f32.partialorder %v1532, 0.0
      %vm1555 = vcmp.gt.f32.partialorder %v1537, 0.0
      %vm1556 = vcmp.gt.f32.partialorder %v1540, 0.0
      %vm1557 = vcmp.gt.f32.partialorder %v1545, 0.0
      %vm1558 = vcmp.gt.f32.partialorder %v1548, 0.0
      %v1559 = vmin.f32 %v1521, 0.0
      %v1560 = vmin.f32 %v1524, 0.0
      %v1561 = vmin.f32 %v1529, 0.0
      %v1562 = vmin.f32 %v1532, 0.0
      %v1563 = vmin.f32 %v1537, 0.0
      %v1564 = vmin.f32 %v1540, 0.0
      %v1565 = vmin.f32 %v1545, 0.0
      %v1566 = vmin.f32 %v1548, 0.0
      %v1567 = vrcp.pop 0.1
      %v1568 = vmul.f32 %v1559, %v1567
      %v1569 = vmul.f32 %v1560, %v1567
      %v1570 = vmul.f32 %v1561, %v1567
      %v1571 = vmul.f32 %v1562, %v1567
      %v1572 = vmul.f32 %v1563, %v1567
      %v1573 = vmul.f32 %v1564, %v1567
      %v1574 = vmul.f32 %v1565, %v1567
      %v1575 = vmul.f32 %v1566, %v1567
      %v1576 = vmul.f32 %v1568, 1.442695
      %v1577 = vpow.pop %v1576
      %v1578 = vmul.f32 %v1569, 1.442695
      %v1579 = vpow.pop %v1578
      %v1580 = vmul.f32 %v1570, 1.442695
      %v1581 = vpow.pop %v1580
      %v1582 = vmul.f32 %v1571, 1.442695
      %v1583 = vpow.pop %v1582
      %v1584 = vmul.f32 %v1572, 1.442695
      %v1585 = vpow.pop %v1584
      %v1586 = vmul.f32 %v1573, 1.442695
      %v1587 = vpow.pop %v1586
      %v1588 = vmul.f32 %v1574, 1.442695
      %v1589 = vpow.pop %v1588
      %v1590 = vmul.f32 %v1575, 1.442695
      %v1591 = vpow.pop %v1590
      %v1592 = vsub.f32 %v1577, 1.0
      %v1593 = vsub.f32 %v1579, 1.0
      %v1594 = vsub.f32 %v1581, 1.0
      %v1595 = vsub.f32 %v1583, 1.0
      %v1596 = vsub.f32 %v1585, 1.0
      %v1597 = vsub.f32 %v1587, 1.0
      %v1598 = vsub.f32 %v1589, 1.0
      %v1599 = vsub.f32 %v1591, 1.0
      %v1600 = vmul.f32 %v1592, 0.1
      %v1601 = vmul.f32 %v1593, 0.1
      %v1602 = vmul.f32 %v1594, 0.1
      %v1603 = vmul.f32 %v1595, 0.1
      %v1604 = vmul.f32 %v1596, 0.1
      %v1605 = vmul.f32 %v1597, 0.1
      %v1606 = vmul.f32 %v1598, 0.1
      %v1607 = vmul.f32 %v1599, 0.1
      %v1608 = vsel %vm1551, %v1521, %v1600
      %v1609 = vsel %vm1552, %v1524, %v1601
      %v1610 = vsel %vm1553, %v1529, %v1602
      %v1611 = vsel %vm1554, %v1532, %v1603
      %v1612 = vsel %vm1555, %v1537, %v1604
      %v1613 = vsel %vm1556, %v1540, %v1605
      %v1614 = vsel %vm1557, %v1545, %v1606
      %v1615 = vsel %vm1558, %v1548, %v1607
      %v1616 = vld [vmem:[%s3] sm:$0xff]
      %v1617 = vld [vmem:[%s3 + $0x8] sm:$0xff]
      %v1618 = vld [vmem:[%s3 + $0x10] sm:$0xff]
      %v1619 = vld [vmem:[%s3 + $0x18] sm:$0xff]
      %v1620 = vld [vmem:[%s3 + $0x20] sm:$0xff]
      %v1621 = vld [vmem:[%s3 + $0x28] sm:$0xff]
      %v1622 = vld [vmem:[%s3 + $0x30] sm:$0xff]
      %v1623 = vld [vmem:[%s3 + $0x38] sm:$0xff]
      %v1624 = vld [vmem:[%s4] sm:$0x1]
      %v1626 = vlaneseq
      %v1627 = vshrl.u32 %v1626, 7
      %v1628 = vsub.s32 0, %v1627
      %v1629 = vrot.slane %v1624, %v1628
      %vm1631 = vcmask 523264
      %v1633 = vsel %vm1631, %v1608, 0
      %v1636 = vsel %vm1631, %v1609, 0
      %v1639 = vsel %vm1631, %v1610, 0
      %v1642 = vsel %vm1631, %v1611, 0
      %v1645 = vsel %vm1631, %v1612, 0
      %v1648 = vsel %vm1631, %v1613, 0
      %v1651 = vsel %vm1631, %v1614, 0
      %v1654 = vsel %vm1631, %v1615, 0
      %1656 = vmatprep.subr.mxu0 0.0
      %1657 = vmatpush1.msra.mxu0 0.0
      %1658 = vmatprep.subr.mxu0 0.0
      %1659 = vmatpush1.msra.mxu0 0.0
      %1660 = vmatprep.subr.mxu0 0.0
      %1661 = vmatpush1.msra.mxu0 0.0
      %1662 = vmatprep.subr.mxu0 0.0
      %1663 = vmatpush1.msra.mxu0 0.0
      %1664 = vmatprep.subr.mxu0 0.0
      %1665 = vmatpush1.msra.mxu0 0.0
      %1666 = vmatprep.subr.mxu0 0.0
      %1667 = vmatpush1.msra.mxu0 0.0
      %1668 = vmatprep.subr.mxu0 0.0
      %1669 = vmatpush1.msra.mxu0 0.0
      %1670 = vmatprep.subr.mxu0 0.0
      %1671 = vmatpush1.msra.mxu0 0.0
      %1672 = vmatprep.subr.mxu0 0.0
      %1673 = vmatpush1.msra.mxu0 %v1623
      %1674 = vmatprep.subr.mxu0 0.0
      %1675 = vmatpush1.msra.mxu0 %v1622
      %1676 = vmatprep.subr.mxu0 0.0
      %1677 = vmatpush1.msra.mxu0 %v1621
      %1678 = vmatprep.subr.mxu0 0.0
      %1679 = vmatpush1.msra.mxu0 %v1620
      %1680 = vmatprep.subr.mxu0 0.0
      %1681 = vmatpush1.msra.mxu0 %v1619
      %1682 = vmatprep.subr.mxu0 0.0
      %1683 = vmatpush1.msra.mxu0 %v1618
      %1684 = vmatprep.subr.mxu0 0.0
      %1685 = vmatpush1.msra.mxu0 %v1617
      %1686 = vmatprep.subr.mxu0 0.0
      %1687 = vmatpush1.msra.mxu0 %v1616
      %1688 = vmatprep.subr.mxu0 0.0
      %1689 = vmatpush2.msra.mxu0 0.0
      %1690 = vmatprep.subr.mxu0 0.0
      %1691 = vmatpush2.msra.mxu0 0.0
      %1692 = vmatprep.subr.mxu0 0.0
      %1693 = vmatpush2.msra.mxu0 0.0
      %1694 = vmatprep.subr.mxu0 0.0
      %1695 = vmatpush2.msra.mxu0 0.0
      %1696 = vmatprep.subr.mxu0 0.0
      %1697 = vmatpush2.msra.mxu0 0.0
      %1698 = vmatprep.subr.mxu0 0.0
      %1699 = vmatpush2.msra.mxu0 0.0
      %1700 = vmatprep.subr.mxu0 0.0
      %1701 = vmatpush2.msra.mxu0 0.0
      %1702 = vmatprep.subr.mxu0 0.0
      %1703 = vmatpush2.msra.mxu0 0.0
      %1704 = vmatprep.subr.mxu0 0.0
      %1705 = vmatpush2.msra.mxu0 0.0
      %1706 = vmatprep.subr.mxu0 0.0
      %1707 = vmatpush2.msra.mxu0 0.0
      %1708 = vmatprep.subr.mxu0 0.0
      %1709 = vmatpush2.msra.mxu0 0.0
      %1710 = vmatprep.subr.mxu0 0.0
      %1711 = vmatpush2.msra.mxu0 0.0
      %1712 = vmatprep.subr.mxu0 0.0
      %1713 = vmatpush2.msra.mxu0 0.0
      %1714 = vmatprep.subr.mxu0 0.0
      %1715 = vmatpush2.msra.mxu0 0.0
      %1716 = vmatprep.subr.mxu0 0.0
      %1717 = vmatpush2.msra.mxu0 0.0
      %1718 = vmatprep.subr.mxu0 0.0
      %1719 = vmatpush2.msra.mxu0 0.0
      %1720 = vmatprep.mubr.f32.mxu0 0.0
      %1721 = vmatmul.mubr.f32.gmra.mxu0 %v1633
      %v1722 = vpop.f32.mrf.mxu0
      %v1723 = vadd.f32 %v1629, %v1722
      %v1724 = vpop.f32.mrf.mxu0
      %1725 = vmatprep.mubr.f32.mxu0 0.0
      %1726 = vmatmul.mubr.f32.gmra.mxu0 %v1636
      %v1727 = vpop.f32.mrf.mxu0
      %v1728 = vadd.f32 %v1629, %v1727
      %v1729 = vpop.f32.mrf.mxu0
      %1730 = vmatprep.mubr.f32.mxu0 0.0
      %1731 = vmatmul.mubr.f32.gmra.mxu0 %v1639
      %v1732 = vpop.f32.mrf.mxu0
      %v1733 = vadd.f32 %v1629, %v1732
      %v1734 = vpop.f32.mrf.mxu0
      %1735 = vmatprep.mubr.f32.mxu0 0.0
      %1736 = vmatmul.mubr.f32.gmra.mxu0 %v1642
      %v1737 = vpop.f32.mrf.mxu0
      %v1738 = vadd.f32 %v1629, %v1737
      %v1739 = vpop.f32.mrf.mxu0
      %1740 = vmatprep.mubr.f32.mxu0 0.0
      %1741 = vmatmul.mubr.f32.gmra.mxu0 %v1645
      %v1742 = vpop.f32.mrf.mxu0
      %v1743 = vadd.f32 %v1629, %v1742
      %v1744 = vpop.f32.mrf.mxu0
      %1745 = vmatprep.mubr.f32.mxu0 0.0
      %1746 = vmatmul.mubr.f32.gmra.mxu0 %v1648
      %v1747 = vpop.f32.mrf.mxu0
      %v1748 = vadd.f32 %v1629, %v1747
      %v1749 = vpop.f32.mrf.mxu0
      %1750 = vmatprep.mubr.f32.mxu0 0.0
      %1751 = vmatmul.mubr.f32.gmra.mxu0 %v1651
      %v1752 = vpop.f32.mrf.mxu0
      %v1753 = vadd.f32 %v1629, %v1752
      %v1754 = vpop.f32.mrf.mxu0
      %1755 = vmatprep.mubr.f32.mxu0 0.0
      %1756 = vmatmul.mubr.f32.gmra.mxu0 %v1654
      %v1757 = vpop.f32.mrf.mxu0
      %v1758 = vadd.f32 %v1629, %v1757
      %v1759 = vpop.f32.mrf.mxu0
      %1760 = vdwg.mxu0
      %vm1761 = vcmp.gt.f32.partialorder %v1723, 0.0
      %vm1762 = vcmp.gt.f32.partialorder %v1728, 0.0
      %vm1763 = vcmp.gt.f32.partialorder %v1733, 0.0
      %vm1764 = vcmp.gt.f32.partialorder %v1738, 0.0
      %vm1765 = vcmp.gt.f32.partialorder %v1743, 0.0
      %vm1766 = vcmp.gt.f32.partialorder %v1748, 0.0
      %vm1767 = vcmp.gt.f32.partialorder %v1753, 0.0
      %vm1768 = vcmp.gt.f32.partialorder %v1758, 0.0
      %v1769 = vmin.f32 %v1723, 0.0
      %v1770 = vmin.f32 %v1728, 0.0
      %v1771 = vmin.f32 %v1733, 0.0
      %v1772 = vmin.f32 %v1738, 0.0
      %v1773 = vmin.f32 %v1743, 0.0
      %v1774 = vmin.f32 %v1748, 0.0
      %v1775 = vmin.f32 %v1753, 0.0
      %v1776 = vmin.f32 %v1758, 0.0
      %v1777 = vmul.f32 %v1769, %v1567
      %v1778 = vmul.f32 %v1770, %v1567
      %v1779 = vmul.f32 %v1771, %v1567
      %v1780 = vmul.f32 %v1772, %v1567
      %v1781 = vmul.f32 %v1773, %v1567
      %v1782 = vmul.f32 %v1774, %v1567
      %v1783 = vmul.f32 %v1775, %v1567
      %v1784 = vmul.f32 %v1776, %v1567
      %v1785 = vmul.f32 %v1777, 1.442695
      %v1786 = vpow.pop %v1785
      %v1787 = vmul.f32 %v1778, 1.442695
      %v1788 = vpow.pop %v1787
      %v1789 = vmul.f32 %v1779, 1.442695
      %v1790 = vpow.pop %v1789
      %v1791 = vmul.f32 %v1780, 1.442695
      %v1792 = vpow.pop %v1791
      %v1793 = vmul.f32 %v1781, 1.442695
      %v1794 = vpow.pop %v1793
      %v1795 = vmul.f32 %v1782, 1.442695
      %v1796 = vpow.pop %v1795
      %v1797 = vmul.f32 %v1783, 1.442695
      %v1798 = vpow.pop %v1797
      %v1799 = vmul.f32 %v1784, 1.442695
      %v1800 = vpow.pop %v1799
      %v1801 = vsub.f32 %v1786, 1.0
      %v1802 = vsub.f32 %v1788, 1.0
      %v1803 = vsub.f32 %v1790, 1.0
      %v1804 = vsub.f32 %v1792, 1.0
      %v1805 = vsub.f32 %v1794, 1.0
      %v1806 = vsub.f32 %v1796, 1.0
      %v1807 = vsub.f32 %v1798, 1.0
      %v1808 = vsub.f32 %v1800, 1.0
      %v1809 = vmul.f32 %v1801, 0.1
      %v1810 = vmul.f32 %v1802, 0.1
      %v1811 = vmul.f32 %v1803, 0.1
      %v1812 = vmul.f32 %v1804, 0.1
      %v1813 = vmul.f32 %v1805, 0.1
      %v1814 = vmul.f32 %v1806, 0.1
      %v1815 = vmul.f32 %v1807, 0.1
      %v1816 = vmul.f32 %v1808, 0.1
      %v1817 = vsel %vm1761, %v1723, %v1809
      %v1818 = vsel %vm1762, %v1728, %v1810
      %v1819 = vsel %vm1763, %v1733, %v1811
      %v1820 = vsel %vm1764, %v1738, %v1812
      %v1821 = vsel %vm1765, %v1743, %v1813
      %v1822 = vsel %vm1766, %v1748, %v1814
      %v1823 = vsel %vm1767, %v1753, %v1815
      %v1824 = vsel %vm1768, %v1758, %v1816
      %v1825 = vld [vmem:[%s5] sm:$0xff]
      %v1826 = vld [vmem:[%s5 + $0x8] sm:$0xff]
      %v1827 = vld [vmem:[%s5 + $0x10] sm:$0xff]
      %v1828 = vld [vmem:[%s5 + $0x18] sm:$0xff]
      %v1829 = vld [vmem:[%s6] sm:$0x1]
      %v1831 = vlaneseq
      %v1832 = vshrl.u32 %v1831, 7
      %v1833 = vsub.s32 0, %v1832
      %v1834 = vrot.slane %v1829, %v1833
      %vm1836 = vcmask 261120
      %v1838 = vsel %vm1836, %v1817, 0
      %v1841 = vsel %vm1836, %v1818, 0
      %v1844 = vsel %vm1836, %v1819, 0
      %v1847 = vsel %vm1836, %v1820, 0
      %v1850 = vsel %vm1836, %v1821, 0
      %v1853 = vsel %vm1836, %v1822, 0
      %v1856 = vsel %vm1836, %v1823, 0
      %v1859 = vsel %vm1836, %v1824, 0
      %1861 = vmatprep.subr.mxu0 0.0
      %1862 = vmatpush1.msra.mxu0 0.0
      %1863 = vmatprep.subr.mxu0 0.0
      %1864 = vmatpush1.msra.mxu0 0.0
      %1865 = vmatprep.subr.mxu0 0.0
      %1866 = vmatpush1.msra.mxu0 0.0
      %1867 = vmatprep.subr.mxu0 0.0
      %1868 = vmatpush1.msra.mxu0 0.0
      %1869 = vmatprep.subr.mxu0 0.0
      %1870 = vmatpush1.msra.mxu0 0.0
      %1871 = vmatprep.subr.mxu0 0.0
      %1872 = vmatpush1.msra.mxu0 0.0
      %1873 = vmatprep.subr.mxu0 0.0
      %1874 = vmatpush1.msra.mxu0 0.0
      %1875 = vmatprep.subr.mxu0 0.0
      %1876 = vmatpush1.msra.mxu0 0.0
      %1877 = vmatprep.subr.mxu0 0.0
      %1878 = vmatpush1.msra.mxu0 0.0
      %1879 = vmatprep.subr.mxu0 0.0
      %1880 = vmatpush1.msra.mxu0 0.0
      %1881 = vmatprep.subr.mxu0 0.0
      %1882 = vmatpush1.msra.mxu0 0.0
      %1883 = vmatprep.subr.mxu0 0.0
      %1884 = vmatpush1.msra.mxu0 0.0
      %1885 = vmatprep.subr.mxu0 0.0
      %1886 = vmatpush1.msra.mxu0 %v1828
      %1887 = vmatprep.subr.mxu0 0.0
      %1888 = vmatpush1.msra.mxu0 %v1827
      %1889 = vmatprep.subr.mxu0 0.0
      %1890 = vmatpush1.msra.mxu0 %v1826
      %1891 = vmatprep.subr.mxu0 0.0
      %1892 = vmatpush1.msra.mxu0 %v1825
      %1893 = vmatprep.subr.mxu0 0.0
      %1894 = vmatpush2.msra.mxu0 0.0
      %1895 = vmatprep.subr.mxu0 0.0
      %1896 = vmatpush2.msra.mxu0 0.0
      %1897 = vmatprep.subr.mxu0 0.0
      %1898 = vmatpush2.msra.mxu0 0.0
      %1899 = vmatprep.subr.mxu0 0.0
      %1900 = vmatpush2.msra.mxu0 0.0
      %1901 = vmatprep.subr.mxu0 0.0
      %1902 = vmatpush2.msra.mxu0 0.0
      %1903 = vmatprep.subr.mxu0 0.0
      %1904 = vmatpush2.msra.mxu0 0.0
      %1905 = vmatprep.subr.mxu0 0.0
      %1906 = vmatpush2.msra.mxu0 0.0
      %1907 = vmatprep.subr.mxu0 0.0
      %1908 = vmatpush2.msra.mxu0 0.0
      %1909 = vmatprep.subr.mxu0 0.0
      %1910 = vmatpush2.msra.mxu0 0.0
      %1911 = vmatprep.subr.mxu0 0.0
      %1912 = vmatpush2.msra.mxu0 0.0
      %1913 = vmatprep.subr.mxu0 0.0
      %1914 = vmatpush2.msra.mxu0 0.0
      %1915 = vmatprep.subr.mxu0 0.0
      %1916 = vmatpush2.msra.mxu0 0.0
      %1917 = vmatprep.subr.mxu0 0.0
      %1918 = vmatpush2.msra.mxu0 0.0
      %1919 = vmatprep.subr.mxu0 0.0
      %1920 = vmatpush2.msra.mxu0 0.0
      %1921 = vmatprep.subr.mxu0 0.0
      %1922 = vmatpush2.msra.mxu0 0.0
      %1923 = vmatprep.subr.mxu0 0.0
      %1924 = vmatpush2.msra.mxu0 0.0
      %1925 = vmatprep.mubr.f32.mxu0 0.0
      %1926 = vmatmul.mubr.f32.gmra.mxu0 %v1838
      %v1927 = vpop.f32.mrf.mxu0
      %v1928 = vadd.f32 %v1834, %v1927
      %v1929 = vpop.f32.mrf.mxu0
      %1930 = vmatprep.mubr.f32.mxu0 0.0
      %1931 = vmatmul.mubr.f32.gmra.mxu0 %v1841
      %v1932 = vpop.f32.mrf.mxu0
      %v1933 = vadd.f32 %v1834, %v1932
      %v1934 = vpop.f32.mrf.mxu0
      %1935 = vmatprep.mubr.f32.mxu0 0.0
      %1936 = vmatmul.mubr.f32.gmra.mxu0 %v1844
      %v1937 = vpop.f32.mrf.mxu0
      %v1938 = vadd.f32 %v1834, %v1937
      %v1939 = vpop.f32.mrf.mxu0
      %1940 = vmatprep.mubr.f32.mxu0 0.0
      %1941 = vmatmul.mubr.f32.gmra.mxu0 %v1847
      %v1942 = vpop.f32.mrf.mxu0
      %v1943 = vadd.f32 %v1834, %v1942
      %v1944 = vpop.f32.mrf.mxu0
      %1945 = vmatprep.mubr.f32.mxu0 0.0
      %1946 = vmatmul.mubr.f32.gmra.mxu0 %v1850
      %v1947 = vpop.f32.mrf.mxu0
      %v1948 = vadd.f32 %v1834, %v1947
      %v1949 = vpop.f32.mrf.mxu0
      %1950 = vmatprep.mubr.f32.mxu0 0.0
      %1951 = vmatmul.mubr.f32.gmra.mxu0 %v1853
      %v1952 = vpop.f32.mrf.mxu0
      %v1953 = vadd.f32 %v1834, %v1952
      %v1954 = vpop.f32.mrf.mxu0
      %1955 = vmatprep.mubr.f32.mxu0 0.0
      %1956 = vmatmul.mubr.f32.gmra.mxu0 %v1856
      %v1957 = vpop.f32.mrf.mxu0
      %v1958 = vadd.f32 %v1834, %v1957
      %v1959 = vpop.f32.mrf.mxu0
      %1960 = vmatprep.mubr.f32.mxu0 0.0
      %1961 = vmatmul.mubr.f32.gmra.mxu0 %v1859
      %v1962 = vpop.f32.mrf.mxu0
      %v1963 = vadd.f32 %v1834, %v1962
      %v1964 = vpop.f32.mrf.mxu0
      %1965 = vdwg.mxu0
      %vm1966 = vcmp.gt.f32.partialorder %v1928, 0.0
      %vm1967 = vcmp.gt.f32.partialorder %v1933, 0.0
      %vm1968 = vcmp.gt.f32.partialorder %v1938, 0.0
      %vm1969 = vcmp.gt.f32.partialorder %v1943, 0.0
      %vm1970 = vcmp.gt.f32.partialorder %v1948, 0.0
      %vm1971 = vcmp.gt.f32.partialorder %v1953, 0.0
      %vm1972 = vcmp.gt.f32.partialorder %v1958, 0.0
      %vm1973 = vcmp.gt.f32.partialorder %v1963, 0.0
      %v1974 = vmin.f32 %v1928, 0.0
      %v1975 = vmin.f32 %v1933, 0.0
      %v1976 = vmin.f32 %v1938, 0.0
      %v1977 = vmin.f32 %v1943, 0.0
      %v1978 = vmin.f32 %v1948, 0.0
      %v1979 = vmin.f32 %v1953, 0.0
      %v1980 = vmin.f32 %v1958, 0.0
      %v1981 = vmin.f32 %v1963, 0.0
      %v1982 = vmul.f32 %v1974, %v1567
      %v1983 = vmul.f32 %v1975, %v1567
      %v1984 = vmul.f32 %v1976, %v1567
      %v1985 = vmul.f32 %v1977, %v1567
      %v1986 = vmul.f32 %v1978, %v1567
      %v1987 = vmul.f32 %v1979, %v1567
      %v1988 = vmul.f32 %v1980, %v1567
      %v1989 = vmul.f32 %v1981, %v1567
      %v1990 = vmul.f32 %v1982, 1.442695
      %v1991 = vpow.pop %v1990
      %v1992 = vmul.f32 %v1983, 1.442695
      %v1993 = vpow.pop %v1992
      %v1994 = vmul.f32 %v1984, 1.442695
      %v1995 = vpow.pop %v1994
      %v1996 = vmul.f32 %v1985, 1.442695
      %v1997 = vpow.pop %v1996
      %v1998 = vmul.f32 %v1986, 1.442695
      %v1999 = vpow.pop %v1998
      %v2000 = vmul.f32 %v1987, 1.442695
      %v2001 = vpow.pop %v2000
      %v2002 = vmul.f32 %v1988, 1.442695
      %v2003 = vpow.pop %v2002
      %v2004 = vmul.f32 %v1989, 1.442695
      %v2005 = vpow.pop %v2004
      %v2006 = vsub.f32 %v1991, 1.0
      %v2007 = vsub.f32 %v1993, 1.0
      %v2008 = vsub.f32 %v1995, 1.0
      %v2009 = vsub.f32 %v1997, 1.0
      %v2010 = vsub.f32 %v1999, 1.0
      %v2011 = vsub.f32 %v2001, 1.0
      %v2012 = vsub.f32 %v2003, 1.0
      %v2013 = vsub.f32 %v2005, 1.0
      %v2014 = vmul.f32 %v2006, 0.1
      %v2015 = vmul.f32 %v2007, 0.1
      %v2016 = vmul.f32 %v2008, 0.1
      %v2017 = vmul.f32 %v2009, 0.1
      %v2018 = vmul.f32 %v2010, 0.1
      %v2019 = vmul.f32 %v2011, 0.1
      %v2020 = vmul.f32 %v2012, 0.1
      %v2021 = vmul.f32 %v2013, 0.1
      %v2022 = vsel %vm1966, %v1928, %v2014
      %v2023 = vsel %vm1967, %v1933, %v2015
      %v2024 = vsel %vm1968, %v1938, %v2016
      %v2025 = vsel %vm1969, %v1943, %v2017
      %v2026 = vsel %vm1970, %v1948, %v2018
      %v2027 = vsel %vm1971, %v1953, %v2019
      %v2028 = vsel %vm1972, %v1958, %v2020
      %v2029 = vsel %vm1973, %v1963, %v2021
      %vm2030 = vcmask 130048
      %v2031 = vsel %vm2030, %v2022, 0.0
      %v2032 = vrot.slane %v2031, 4
      %v2033 = vadd.f32 %v2031, %v2032
      %v2034 = vrot.slane %v2033, 2
      %v2035 = vadd.f32 %v2033, %v2034
      %v2036 = vrot.slane %v2035, 1
      %v2037 = vadd.f32 %v2035, %v2036
      %v2038 = vsel %vm2030, %v2023, 0.0
      %v2039 = vrot.slane %v2038, 4
      %v2040 = vadd.f32 %v2038, %v2039
      %v2041 = vrot.slane %v2040, 2
      %v2042 = vadd.f32 %v2040, %v2041
      %v2043 = vrot.slane %v2042, 1
      %v2044 = vadd.f32 %v2042, %v2043
      %v2045 = vsel %vm2030, %v2024, 0.0
      %v2046 = vrot.slane %v2045, 4
      %v2047 = vadd.f32 %v2045, %v2046
      %v2048 = vrot.slane %v2047, 2
      %v2049 = vadd.f32 %v2047, %v2048
      %v2050 = vrot.slane %v2049, 1
      %v2051 = vadd.f32 %v2049, %v2050
      %v2052 = vsel %vm2030, %v2025, 0.0
      %v2053 = vrot.slane %v2052, 4
      %v2054 = vadd.f32 %v2052, %v2053
      %v2055 = vrot.slane %v2054, 2
      %v2056 = vadd.f32 %v2054, %v2055
      %v2057 = vrot.slane %v2056, 1
      %v2058 = vadd.f32 %v2056, %v2057
      %v2059 = vsel %vm2030, %v2026, 0.0
      %v2060 = vrot.slane %v2059, 4
      %v2061 = vadd.f32 %v2059, %v2060
      %v2062 = vrot.slane %v2061, 2
      %v2063 = vadd.f32 %v2061, %v2062
      %v2064 = vrot.slane %v2063, 1
      %v2065 = vadd.f32 %v2063, %v2064
      %v2066 = vsel %vm2030, %v2027, 0.0
      %v2067 = vrot.slane %v2066, 4
      %v2068 = vadd.f32 %v2066, %v2067
      %v2069 = vrot.slane %v2068, 2
      %v2070 = vadd.f32 %v2068, %v2069
      %v2071 = vrot.slane %v2070, 1
      %v2072 = vadd.f32 %v2070, %v2071
      %v2073 = vsel %vm2030, %v2028, 0.0
      %v2074 = vrot.slane %v2073, 4
      %v2075 = vadd.f32 %v2073, %v2074
      %v2076 = vrot.slane %v2075, 2
      %v2077 = vadd.f32 %v2075, %v2076
      %v2078 = vrot.slane %v2077, 1
      %v2079 = vadd.f32 %v2077, %v2078
      %v2080 = vsel %vm2030, %v2029, 0.0
      %v2081 = vrot.slane %v2080, 4
      %v2082 = vadd.f32 %v2080, %v2081
      %v2083 = vrot.slane %v2082, 2
      %v2084 = vadd.f32 %v2082, %v2083
      %v2085 = vrot.slane %v2084, 1
      %v2086 = vadd.f32 %v2084, %v2085
      %v2087 = vld [vmem:[%s7] sm:$0xff]
      %v2088 = vld [vmem:[%s7 + $0x8] sm:$0xff]
      %v2089 = vld [vmem:[#allocation2] sm:$0x1]
      %v2090 = vmul.f32 %v2089, 8.0
      %v2092 = vlaneseq
      %v2093 = vshrl.u32 %v2092, 7
      %v2094 = vsub.s32 0, %v2093
      %v2095 = vrot.slane %v2090, %v2094
      %vm2105 = vcmask 1041409
      %v2106 = vsel %vm2105, %v2044, %v2037
      %vm2107 = vcmask 1042434
      %v2108 = vsel %vm2107, %v2051, %v2106
      %vm2109 = vcmask 1043459
      %v2110 = vsel %vm2109, %v2058, %v2108
      %vm2111 = vcmask 1044484
      %v2112 = vsel %vm2111, %v2065, %v2110
      %vm2113 = vcmask 1045509
      %v2114 = vsel %vm2113, %v2072, %v2112
      %vm2115 = vcmask 1046534
      %v2116 = vsel %vm2115, %v2079, %v2114
      %vm2117 = vcmask 1047559
      %v2118 = vsel %vm2117, %v2086, %v2116
      %v2119 = vsel %vm2030, %v2118, 0
      %2121 = vmatprep.subr.mxu0 0.0
      %2122 = vmatpush1.msra.mxu0 0.0
      %2123 = vmatprep.subr.mxu0 0.0
      %2124 = vmatpush1.msra.mxu0 0.0
      %2125 = vmatprep.subr.mxu0 0.0
      %2126 = vmatpush1.msra.mxu0 0.0
      %2127 = vmatprep.subr.mxu0 0.0
      %2128 = vmatpush1.msra.mxu0 0.0
      %2129 = vmatprep.subr.mxu0 0.0
      %2130 = vmatpush1.msra.mxu0 0.0
      %2131 = vmatprep.subr.mxu0 0.0
      %2132 = vmatpush1.msra.mxu0 0.0
      %2133 = vmatprep.subr.mxu0 0.0
      %2134 = vmatpush1.msra.mxu0 0.0
      %2135 = vmatprep.subr.mxu0 0.0
      %2136 = vmatpush1.msra.mxu0 0.0
      %2137 = vmatprep.subr.mxu0 0.0
      %2138 = vmatpush1.msra.mxu0 0.0
      %2139 = vmatprep.subr.mxu0 0.0
      %2140 = vmatpush1.msra.mxu0 0.0
      %2141 = vmatprep.subr.mxu0 0.0
      %2142 = vmatpush1.msra.mxu0 0.0
      %2143 = vmatprep.subr.mxu0 0.0
      %2144 = vmatpush1.msra.mxu0 0.0
      %2145 = vmatprep.subr.mxu0 0.0
      %2146 = vmatpush1.msra.mxu0 0.0
      %2147 = vmatprep.subr.mxu0 0.0
      %2148 = vmatpush1.msra.mxu0 0.0
      %2149 = vmatprep.subr.mxu0 0.0
      %2150 = vmatpush1.msra.mxu0 %v2088
      %2151 = vmatprep.subr.mxu0 0.0
      %2152 = vmatpush1.msra.mxu0 %v2087
      %2153 = vmatprep.subr.mxu0 0.0
      %2154 = vmatpush2.msra.mxu0 0.0
      %2155 = vmatprep.subr.mxu0 0.0
      %2156 = vmatpush2.msra.mxu0 0.0
      %2157 = vmatprep.subr.mxu0 0.0
      %2158 = vmatpush2.msra.mxu0 0.0
      %2159 = vmatprep.subr.mxu0 0.0
      %2160 = vmatpush2.msra.mxu0 0.0
      %2161 = vmatprep.subr.mxu0 0.0
      %2162 = vmatpush2.msra.mxu0 0.0
      %2163 = vmatprep.subr.mxu0 0.0
      %2164 = vmatpush2.msra.mxu0 0.0
      %2165 = vmatprep.subr.mxu0 0.0
      %2166 = vmatpush2.msra.mxu0 0.0
      %2167 = vmatprep.subr.mxu0 0.0
      %2168 = vmatpush2.msra.mxu0 0.0
      %2169 = vmatprep.subr.mxu0 0.0
      %2170 = vmatpush2.msra.mxu0 0.0
      %2171 = vmatprep.subr.mxu0 0.0
      %2172 = vmatpush2.msra.mxu0 0.0
      %2173 = vmatprep.subr.mxu0 0.0
      %2174 = vmatpush2.msra.mxu0 0.0
      %2175 = vmatprep.subr.mxu0 0.0
      %2176 = vmatpush2.msra.mxu0 0.0
      %2177 = vmatprep.subr.mxu0 0.0
      %2178 = vmatpush2.msra.mxu0 0.0
      %2179 = vmatprep.subr.mxu0 0.0
      %2180 = vmatpush2.msra.mxu0 0.0
      %2181 = vmatprep.subr.mxu0 0.0
      %2182 = vmatpush2.msra.mxu0 0.0
      %2183 = vmatprep.subr.mxu0 0.0
      %2184 = vmatpush2.msra.mxu0 0.0
      %2185 = vmatprep.mubr.f32.mxu0 0.0
      %2186 = vmatmul.mubr.f32.gmra.mxu0 %v2119
      %v2187 = vpop.f32.mrf.mxu0
      %v2188 = vadd.f32 %v2095, %v2187
      %v2189 = vpop.f32.mrf.mxu0
      %2190 = vdwg.mxu0
      %vm2191 = vcmask 7168
      %2192 = vst.msk [vmem:[%s337] sm:$0xff] %vm2191, %v2188
      %p2193 = scmp.lt.s32.totalorder %s22, 1
      %s2194 = scalar_select %p2193, %s22, 1
      %s2195 = smul.addr %s2194, 8
      %s2196 = scalar_lea.vmem %s9, %s2195
      // Predicated region
      $region57: #{aninnp_forward.1} parent=55 // pred_check
        %p2197 = pneg %p234
      $region58: #{aninnp_forward.1} parent=55 // pred_check_branch
        %2199 = sbr.rel (%p2197) target = $region60
      $region59: #{aninnp_forward.1} parent=55 // pred_region
        _
      $region60: #{aninnp_forward.1} parent=55 // pred_fallthru
        _
    $region56: #{aninnp_forward.1} parent=5 // pred_fallthru
      _
    %p2200 = scmp.le.s32.totalorder 2, %s17
    // Predicated region
    $region61: #{aninnp_forward.1} parent=5 // pred_check
      %p2201 = pneg %p2200
    $region62: #{aninnp_forward.1} parent=5 // pred_check_branch
      %2203 = sbr.rel (%p2201) target = $region64
    $region63: #{aninnp_forward.1} parent=5 // pred_region
      %s2204 = ssub.s32 %s17, 2
      // Predicated region
      $region65: #{aninnp_forward.1} parent=63 // pred_check
        %p2205 = pneg %p240
      $region66: #{aninnp_forward.1} parent=63 // pred_check_branch
        %2207 = sbr.rel (%p2205) target = $region68
      $region67: #{aninnp_forward.1} parent=63 // pred_region
        %p2208 = scmp.lt.s32.totalorder %s23, 1
        %s2209 = scalar_select %p2208, %s23, 1
        %s2210 = smul.addr %s2209, 8
        %s2211 = scalar_lea.vmem %s9, %s2210
      $region68: #{aninnp_forward.1} parent=63 // pred_fallthru
        _
    $region64: #{aninnp_forward.1} parent=5 // pred_fallthru
      _
  $region6: #{aninnp_forward.1} parent=0 // loop_footer
    %s21 = sadd.s32 1, %s17
  $region7: #{aninnp_forward.1} parent=0 // loop_footer_branch
    %16 = sbr.rel target = $region3
  $region8: #{aninnp_forward.1} parent=0 // loop_exit
    _

</llo_original>
